<compile_context>
chip_gen: v5e
topology: v5e:2x2
jax: 0.10.0
libtpu: 0.0.40
codegen_flags: <defaults>
</compile_context>

<pallas_src>
import jax
import jax.numpy as jnp
from jax import lax
from jax.experimental import pallas as pl
from jax.experimental.pallas import tpu as pltpu


def _round_up(x, m):
    return ((x + m - 1) // m) * m


def _make_kernel(compute_dtype):
    cd = jnp.dtype(compute_dtype)
    exact = cd == jnp.dtype(jnp.float32)
    precision = lax.Precision.HIGHEST if exact else None

    def _normalize(e, denom):
        if exact:
            return e / denom
        return e * pl.reciprocal(denom, approx=True)

    def kernel(c_ref, q_ref, cm_ref, qm_ref, p_ref, out_ref):
        # Block shapes (all padded: CL%8==0, QL%128==0, Hp%128==0):
        #   c_ref  : (1, CL, Hp)      qm_ref : (1, 1, QL)
        #   q_ref  : (1, QL, Hp)      p_ref  : (4, Hp)
        #   cm_ref : (1, CL, 1)       out_ref: (1, CL, 4*Hp)
        c = c_ref[0]                          # (CL, Hp) f32
        q = q_ref[0]                          # (QL, Hp) f32
        cm = cm_ref[0] > 0                    # (CL, 1) bool, True == keep
        qm = qm_ref[0] > 0                    # (1, QL) bool, True == keep
        cm_f = cm.astype(jnp.float32)
        qm_f = qm.astype(jnp.float32)

        p = p_ref[...]                        # (4, Hp) f32
        c_w = p[0:1, :]                       # (1, Hp)
        q_w = p[1:2, :]                       # (1, Hp)
        cq_w = p[2:3, :]                      # (1, Hp)
        bias = p[3:4, 0:1]                    # (1, 1)

        Hp = c.shape[-1]
        contract_last = (((1,), (1,)), ((), ()))   # row·row, no transpose
        contract_first = (((0,), (0,)), ((), ()))  # col·col, no transpose
        contract_std = (((1,), (0,)), ((), ()))

        # Similarity matrix: s = (c*cq_w) q^T + (c c_w) 1^T + 1 (q q_w)^T + bias.
        # The q_w term is folded into the MXU contraction: (c*cq_w + q_w) q^T.
        c_mod = c * cq_w + q_w                                       # (CL, Hp)
        s = lax.dot_general(c_mod.astype(cd), q.astype(cd), contract_last,
                            precision=precision,
                            preferred_element_type=jnp.float32)     # (CL, QL)
        s = s + jnp.sum(c * c_w, axis=-1, keepdims=True) + bias

        neg = jnp.float32(-1e30)

        # c2q attention: masked softmax over q_len (lane axis), f32 throughout.
        # `where` only for the max; numerator masking is a clamp+multiply
        # (min(.,0) keeps the masked exp finite, *qm_f zeroes it exactly).
        m1 = jnp.max(jnp.where(qm, s, neg), axis=-1, keepdims=True)
        e1 = jnp.exp(jnp.minimum(s - m1, 0.0)) * qm_f
        s1_att = _normalize(e1, jnp.sum(e1, axis=-1, keepdims=True))

        # q2c attention: masked softmax over c_len (sublane axis), f32 throughout.
        m2 = jnp.max(jnp.where(cm, s, neg), axis=0, keepdims=True)
        e2 = jnp.exp(jnp.minimum(s - m2, 0.0)) * cm_f
        s2_att = _normalize(e2, jnp.sum(e2, axis=0, keepdims=True))

        c_c = c.astype(cd)
        s1c = s1_att.astype(cd)

        # Reassociated q2c value: V = s2^T @ c   (QL, Hp) — contraction over
        # c_len (dim 0 of both), no explicit transpose.
        v = lax.dot_general(s2_att.astype(cd), c_c, contract_first,
                            precision=precision,
                            preferred_element_type=jnp.float32)

        # Fuse a = s1 @ q and b = s1 @ V into one matmul with shared K=q_len.
        rhs = jnp.concatenate([q.astype(cd), v.astype(cd)], axis=-1)  # (QL, 2Hp)
        ab = lax.dot_general(s1c, rhs, contract_std,
                             precision=precision,
                             preferred_element_type=jnp.float32)     # (CL, 2Hp)
        a = ab[:, 0:Hp]
        b2c = ab[:, Hp:2 * Hp]

        # cat([c, a, c*a, c*b], dim=2) streamed into 128-lane-aligned slices.
        od = out_ref.dtype
        out_ref[0, :, 0:Hp] = c.astype(od)
        out_ref[0, :, Hp:2 * Hp] = a.astype(od)
        out_ref[0, :, 2 * Hp:3 * Hp] = (c * a).astype(od)
        out_ref[0, :, 3 * Hp:4 * Hp] = (c * b2c).astype(od)

    return kernel


def bidaf_attention(c, q, c_mask, q_mask, c_weight, q_weight, cq_weight, bias,
                    *, compute_dtype=jnp.bfloat16, out_dtype=jnp.float32):
    """Pallas TPU forward pass of BiDAFAttention (eval mode).

    c_weight : (H, 1)      q_weight : (H, 1)
    cq_weight: (1, 1, H)   bias     : (1,) or scalar
    c_mask / q_mask: bool, True == valid token (layers.py masked_softmax convention).
    compute_dtype: dtype of MXU matmul inputs (f32 accumulation always);
                   jnp.float32 selects the exact path (HIGHEST precision dots,
                   exact softmax division).
    out_dtype: dtype of the (B, c_len, 4H) output (bf16 halves HBM writeback on
               bandwidth-limited v5e).
    """
    B, c_len, H = c.shape
    q_len = q.shape[1]

    # Lane/sublane-dense padding: H and q_len to multiples of 128 (lane axis of
    # the output chunks / score matrix), c_len to a multiple of 8 (sublanes).
    Hp = _round_up(H, 128)
    CLp = _round_up(c_len, 8)
    QLp = _round_up(q_len, 128)

    c_p = jnp.pad(c.astype(jnp.float32), ((0, 0), (0, CLp - c_len), (0, Hp - H)))
    q_p = jnp.pad(q.astype(jnp.float32), ((0, 0), (0, QLp - q_len), (0, Hp - H)))
    c_mask_p = jnp.pad(c_mask.astype(jnp.int32),
                       ((0, 0), (0, CLp - c_len))).reshape(B, CLp, 1)
    q_mask_p = jnp.pad(q_mask.astype(jnp.int32),
                       ((0, 0), (0, QLp - q_len))).reshape(B, 1, QLp)

    # Pack the tiny parameters into one constant-index (4, Hp) block.
    params = jnp.zeros((4, Hp), jnp.float32)
    params = params.at[0, :H].set(c_weight.reshape(H).astype(jnp.float32))
    params = params.at[1, :H].set(q_weight.reshape(H).astype(jnp.float32))
    params = params.at[2, :H].set(cq_weight.reshape(H).astype(jnp.float32))
    params = params.at[3, 0].set(jnp.asarray(bias, jnp.float32).reshape(()))

    kernel = _make_kernel(compute_dtype)

    # Advisory cost estimate (reassociated: similarity + V + fused a/b matmul).
    flops = 2 * B * (CLp * QLp * Hp          # similarity matmul
                     + CLp * QLp * Hp        # V = s2^T @ c
                     + CLp * QLp * 2 * Hp)   # fused [a | b] = s1 @ [q | V]
    transcendentals = 2 * B * CLp * QLp      # two exps over the score matrix
    out_itemsize = jnp.dtype(out_dtype).itemsize
    bytes_accessed = (4 * B * (CLp * Hp + QLp * Hp + CLp + QLp) + 4 * 4 * Hp
                      + out_itemsize * B * CLp * 4 * Hp)

    # Right-sized VMEM limit: double-buffered per-step blocks + live temps +
    # headroom, capped at 48 MiB so Mosaic keeps scratch headroom on v7x
    # (64 MiB physical per TC); well above the 16/32 MiB defaults on v5e/v6e.
    cd_itemsize = jnp.dtype(compute_dtype).itemsize
    in_bytes = 4 * (CLp * Hp + QLp * Hp + CLp + QLp + 4 * Hp)
    out_bytes = out_itemsize * CLp * 4 * Hp
    temp_bytes = (4 * (4 * CLp * QLp + 4 * CLp * Hp + 2 * QLp * Hp + 2 * CLp * Hp)
                  + cd_itemsize * (2 * CLp * QLp + CLp * Hp + 2 * QLp * Hp))
    vmem_limit = 2 * (in_bytes + out_bytes) + temp_bytes + (4 << 20)
    vmem_limit = max(16 << 20, min(int(vmem_limit), 48 << 20))

    out_p = pl.pallas_call(
        kernel,
        out_shape=jax.ShapeDtypeStruct((B, CLp, 4 * Hp), out_dtype),
        grid_spec=pltpu.PrefetchScalarGridSpec(
            num_scalar_prefetch=0,
            grid=(B,),
            in_specs=[
                pl.BlockSpec((1, CLp, Hp), lambda b: (b, 0, 0)),
                pl.BlockSpec((1, QLp, Hp), lambda b: (b, 0, 0)),
                pl.BlockSpec((1, CLp, 1), lambda b: (b, 0, 0)),
                pl.BlockSpec((1, 1, QLp), lambda b: (b, 0, 0)),
                pl.BlockSpec((4, Hp), lambda b: (0, 0)),
            ],
            out_specs=pl.BlockSpec((1, CLp, 4 * Hp), lambda b: (b, 0, 0)),
        ),
        compiler_params=pltpu.CompilerParams(
            dimension_semantics=("parallel",),   # batch rows split across TCs (v7x)
            vmem_limit_bytes=vmem_limit,
        ),
        cost_estimate=pl.CostEstimate(
            flops=flops, transcendentals=transcendentals,
            bytes_accessed=bytes_accessed),
    )(c_p, q_p, c_mask_p, q_mask_p, params)

    if Hp == H and CLp == c_len:
        return out_p
    # Strip padding: slice the four Hp-strided chunks back to H and c_len.
    chunks = [out_p[:, :c_len, k * Hp:k * Hp + H] for k in range(4)]
    return jnp.concatenate(chunks, axis=-1)


def reference(c, q, c_mask, q_mask, c_weight, q_weight, cq_weight, bias):
    """Pure-JAX f32 reference mirroring the PyTorch forward (eval mode)."""
    P = lax.Precision.HIGHEST
    s0 = jnp.matmul(c, c_weight, precision=P)                        # (B, c_len, 1)
    s1 = jnp.swapaxes(jnp.matmul(q, q_weight, precision=P), 1, 2)    # (B, 1, q_len)
    s2 = jnp.einsum("bch,bqh->bcq", c * cq_weight, q, precision=P)   # (B, c_len, q_len)
    s = s0 + s1 + s2 + jnp.asarray(bias, jnp.float32).reshape(())
    neg = jnp.float32(-1e30)
    s1a = jax.nn.softmax(jnp.where(q_mask[:, None, :], s, neg), axis=2)
    s2a = jax.nn.softmax(jnp.where(c_mask[:, :, None], s, neg), axis=1)
    a = jnp.einsum("bcq,bqh->bch", s1a, q, precision=P)
    t = jnp.einsum("bcq,bdq->bcd", s1a, s2a, precision=P)
    b = jnp.einsum("bcd,bdh->bch", t, c, precision=P)
    return jnp.concatenate([c, a, c * a, c * b], axis=2)


if __name__ == "__main__":
    # Small, module-consistent shapes.
    B = 2
    c_len = 16
    q_len = 8
    H = 32          # feature size of c/q (2*hidden_size in the original model)

    key = jax.random.PRNGKey(0)
    k1, k2, k3, k4, k5 = jax.random.split(key, 5)

    c = jax.random.normal(k1, (B, c_len, H), dtype=jnp.float32)
    q = jax.random.normal(k2, (B, q_len, H), dtype=jnp.float32)

    # Masks: True == valid token (padding is masked out), as in layers.py.
    c_lens = jnp.array([c_len, c_len - 3], dtype=jnp.int32)
    q_lens = jnp.array([q_len, q_len - 3], dtype=jnp.int32)
    c_mask = jnp.arange(c_len)[None, :] < c_lens[:, None]     # (B, c_len) bool
    q_mask = jnp.arange(q_len)[None, :] < q_lens[:, None]     # (B, q_len) bool

    # Xavier-uniform-ish parameters (deterministic).
    bound = (6.0 / (H + 1)) ** 0.5
    c_weight = jax.random.uniform(k3, (H, 1), jnp.float32, -bound, bound)
    q_weight = jax.random.uniform(k4, (H, 1), jnp.float32, -bound, bound)
    cq_weight = jax.random.uniform(k5, (1, 1, H), jnp.float32, -bound, bound)
    bias = jnp.array([0.1], dtype=jnp.float32)

    ref = reference(c, q, c_mask, q_mask, c_weight, q_weight, cq_weight, bias)

    # Exact-precision path (f32 MXU inputs, HIGHEST precision, exact softmax
    # division) — tight check against the reference.
    out_f32 = bidaf_attention(c, q, c_mask, q_mask, c_weight, q_weight,
                              cq_weight, bias, compute_dtype=jnp.float32)
    out_f32 = jax.block_until_ready(out_f32)
    assert out_f32.shape == (B, c_len, 4 * H)
    assert jnp.allclose(out_f32, ref, atol=2e-4, rtol=2e-4), "f32 kernel mismatch"

    # Default mixed-precision path (bf16 MXU inputs, f32 accumulation) — sanity
    # check at bf16-appropriate tolerance.
    out_bf16 = bidaf_attention(c, q, c_mask, q_mask, c_weight, q_weight,
                               cq_weight, bias)
    out_bf16 = jax.block_until_ready(out_bf16)
    assert out_bf16.shape == (B, c_len, 4 * H)
    assert jnp.allclose(out_bf16, ref, atol=1e-1, rtol=1e-1), "bf16 kernel mismatch"

    print("KERNEL_OK")
</pallas_src>

<mosaic_0001>
module attributes {stable_mosaic.version = 11 : i64} {
  func.func @kernel(%arg0: i32, %arg1: memref<1x16x128xf32, #tpu.memory_space<vmem>>, %arg2: memref<1x128x128xf32, #tpu.memory_space<vmem>>, %arg3: memref<1x16x1xi32, #tpu.memory_space<vmem>>, %arg4: memref<1x1x128xi32, #tpu.memory_space<vmem>>, %arg5: memref<4x128xf32, #tpu.memory_space<vmem>>, %arg6: memref<1x16x512xf32, #tpu.memory_space<vmem>>) attributes {dimension_semantics = [#tpu.dimension_semantics<parallel>], iteration_bounds = array<i64: 2>, scalar_prefetch = 0 : i64, scratch_operands = 0 : i64, tpu.core_type = #tpu.core_type<tc>, window_params = [{transform_indices = @transform_0, window_bounds = array<i64: 1, 16, 128>}, {transform_indices = @transform_1, window_bounds = array<i64: 1, 128, 128>}, {transform_indices = @transform_2, window_bounds = array<i64: 1, 16, 1>}, {transform_indices = @transform_3, window_bounds = array<i64: 1, 1, 128>}, {pipeline_mode = #tpu.pipeline_mode<synchronous>, transform_indices = @transform_4, window_bounds = array<i64: 4, 128>}, {transform_indices = @transform_5, window_bounds = array<i64: 1, 16, 512>}]} {
    %c0 = arith.constant 0 : index
    %c0_0 = arith.constant 0 : index
    %c0_1 = arith.constant 0 : index
    %0 = vector.load %arg1[%c0, %c0_0, %c0_1] : memref<1x16x128xf32, #tpu.memory_space<vmem>>, vector<1x16x128xf32>
    %1 = vector.shape_cast %0 : vector<1x16x128xf32> to vector<16x128xf32>
    %c0_2 = arith.constant 0 : index
    %c0_3 = arith.constant 0 : index
    %c0_4 = arith.constant 0 : index
    %2 = vector.load %arg2[%c0_2, %c0_3, %c0_4] : memref<1x128x128xf32, #tpu.memory_space<vmem>>, vector<1x128x128xf32>
    %3 = vector.shape_cast %2 : vector<1x128x128xf32> to vector<128x128xf32>
    %c0_5 = arith.constant 0 : index
    %c0_6 = arith.constant 0 : index
    %c0_7 = arith.constant 0 : index
    %4 = vector.load %arg3[%c0_5, %c0_6, %c0_7] : memref<1x16x1xi32, #tpu.memory_space<vmem>>, vector<1x16x1xi32>
    %5 = vector.shape_cast %4 : vector<1x16x1xi32> to vector<16x1xi32>
    %c0_i32 = arith.constant 0 : i32
    %6 = vector.broadcast %c0_i32 : i32 to vector<16x1xi32>
    %7 = arith.cmpi sgt, %5, %6 : vector<16x1xi32>
    %c0_8 = arith.constant 0 : index
    %c0_9 = arith.constant 0 : index
    %c0_10 = arith.constant 0 : index
    %8 = vector.load %arg4[%c0_8, %c0_9, %c0_10] : memref<1x1x128xi32, #tpu.memory_space<vmem>>, vector<1x1x128xi32>
    %9 = vector.shape_cast %8 : vector<1x1x128xi32> to vector<1x128xi32>
    %c0_i32_11 = arith.constant 0 : i32
    %10 = vector.broadcast %c0_i32_11 : i32 to vector<1x128xi32>
    %11 = arith.cmpi sgt, %9, %10 : vector<1x128xi32>
    %12 = arith.extui %7 : vector<16x1xi1> to vector<16x1xi32>
    %13 = arith.sitofp %12 : vector<16x1xi32> to vector<16x1xf32>
    %14 = arith.extui %11 : vector<1x128xi1> to vector<1x128xi32>
    %15 = arith.sitofp %14 : vector<1x128xi32> to vector<1x128xf32>
    %c0_12 = arith.constant 0 : index
    %c0_13 = arith.constant 0 : index
    %16 = vector.load %arg5[%c0_12, %c0_13] : memref<4x128xf32, #tpu.memory_space<vmem>>, vector<4x128xf32>
    %17 = vector.extract_strided_slice %16 {offsets = [0, 0], sizes = [1, 128], strides = [1, 1]} : vector<4x128xf32> to vector<1x128xf32>
    %18 = vector.extract_strided_slice %16 {offsets = [1, 0], sizes = [1, 128], strides = [1, 1]} : vector<4x128xf32> to vector<1x128xf32>
    %19 = vector.extract_strided_slice %16 {offsets = [2, 0], sizes = [1, 128], strides = [1, 1]} : vector<4x128xf32> to vector<1x128xf32>
    %20 = vector.extract_strided_slice %16 {offsets = [3, 0], sizes = [1, 1], strides = [1, 1]} : vector<4x128xf32> to vector<1x1xf32>
    %21 = vector.broadcast %19 : vector<1x128xf32> to vector<16x128xf32>
    %22 = arith.mulf %1, %21 : vector<16x128xf32>
    %23 = vector.broadcast %18 : vector<1x128xf32> to vector<16x128xf32>
    %24 = arith.addf %22, %23 : vector<16x128xf32>
    %cst = arith.constant dense<0.000000e+00> : vector<16x128xf32>
    %25 = tpu.matmul %24, %3, %cst {dimension_numbers = #tpu.dot_dimension_numbers<[1], [1], [0], [0], [0, 0, 1, 0], [], []>, precision = #tpu.contract_precision<fp32>} : vector<16x128xf32>, vector<128x128xf32>, vector<16x128xf32> -> vector<16x128xf32>
    %26 = vector.broadcast %17 : vector<1x128xf32> to vector<16x128xf32>
    %27 = arith.mulf %1, %26 : vector<16x128xf32>
    %cst_14 = arith.constant dense<0.000000e+00> : vector<16xf32>
    %28 = vector.multi_reduction <add>, %27, %cst_14 [1] : vector<16x128xf32> to vector<16xf32>
    %29 = vector.shape_cast %28 : vector<16xf32> to vector<16x1xf32>
    %30 = vector.broadcast %29 : vector<16x1xf32> to vector<16x128xf32>
    %31 = arith.addf %25, %30 : vector<16x128xf32>
    %32 = vector.broadcast %20 : vector<1x1xf32> to vector<16x128xf32>
    %33 = arith.addf %31, %32 : vector<16x128xf32>
    %cst_15 = arith.constant -1.000000e+30 : f32
    %34 = vector.shape_cast %11 : vector<1x128xi1> to vector<1x128xi1>
    %35 = vector.broadcast %34 : vector<1x128xi1> to vector<16x128xi1>
    %36 = vector.broadcast %cst_15 : f32 to vector<16x128xf32>
    %37 = arith.select %35, %33, %36 : vector<16x128xi1>, vector<16x128xf32>
    %cst_16 = arith.constant dense<0xFF800000> : vector<16xf32>
    %38 = vector.multi_reduction <maximumf>, %37, %cst_16 [1] : vector<16x128xf32> to vector<16xf32>
    %39 = vector.shape_cast %38 : vector<16xf32> to vector<16x1xf32>
    %40 = vector.broadcast %39 : vector<16x1xf32> to vector<16x128xf32>
    %41 = arith.subf %33, %40 : vector<16x128xf32>
    %cst_17 = arith.constant 0.000000e+00 : f32
    %42 = vector.broadcast %cst_17 : f32 to vector<16x128xf32>
    %43 = arith.minimumf %41, %42 : vector<16x128xf32>
    %44 = math.exp %43 : vector<16x128xf32>
    %45 = vector.broadcast %15 : vector<1x128xf32> to vector<16x128xf32>
    %46 = arith.mulf %44, %45 : vector<16x128xf32>
    %cst_18 = arith.constant dense<0.000000e+00> : vector<16xf32>
    %47 = vector.multi_reduction <add>, %46, %cst_18 [1] : vector<16x128xf32> to vector<16xf32>
    %48 = vector.shape_cast %47 : vector<16xf32> to vector<16x1xf32>
    %49 = vector.broadcast %48 : vector<16x1xf32> to vector<16x128xf32>
    %50 = arith.divf %46, %49 : vector<16x128xf32>
    %cst_19 = arith.constant -1.000000e+30 : f32
    %51 = vector.shape_cast %7 : vector<16x1xi1> to vector<16x1xi1>
    %52 = vector.broadcast %51 : vector<16x1xi1> to vector<16x128xi1>
    %53 = vector.broadcast %cst_19 : f32 to vector<16x128xf32>
    %54 = arith.select %52, %33, %53 : vector<16x128xi1>, vector<16x128xf32>
    %cst_20 = arith.constant dense<0xFF800000> : vector<128xf32>
    %55 = vector.multi_reduction <maximumf>, %54, %cst_20 [0] : vector<16x128xf32> to vector<128xf32>
    %56 = vector.shape_cast %55 : vector<128xf32> to vector<1x128xf32>
    %57 = vector.broadcast %56 : vector<1x128xf32> to vector<16x128xf32>
    %58 = arith.subf %33, %57 : vector<16x128xf32>
    %cst_21 = arith.constant 0.000000e+00 : f32
    %59 = vector.broadcast %cst_21 : f32 to vector<16x128xf32>
    %60 = arith.minimumf %58, %59 : vector<16x128xf32>
    %61 = math.exp %60 : vector<16x128xf32>
    %62 = vector.broadcast %13 : vector<16x1xf32> to vector<16x128xf32>
    %63 = arith.mulf %61, %62 : vector<16x128xf32>
    %cst_22 = arith.constant dense<0.000000e+00> : vector<128xf32>
    %64 = vector.multi_reduction <add>, %63, %cst_22 [0] : vector<16x128xf32> to vector<128xf32>
    %65 = vector.shape_cast %64 : vector<128xf32> to vector<1x128xf32>
    %66 = vector.broadcast %65 : vector<1x128xf32> to vector<16x128xf32>
    %67 = arith.divf %63, %66 : vector<16x128xf32>
    %cst_23 = arith.constant dense<0.000000e+00> : vector<128x128xf32>
    %68 = tpu.matmul %67, %1, %cst_23 {dimension_numbers = #tpu.dot_dimension_numbers<[0], [0], [1], [1], [0, 1, 1, 1], [], []>, precision = #tpu.contract_precision<fp32>} : vector<16x128xf32>, vector<16x128xf32>, vector<128x128xf32> -> vector<128x128xf32>
    %69 = tpu.concatenate %3, %68 in 1 : vector<128x128xf32>, vector<128x128xf32> -> vector<128x256xf32>
    %cst_24 = arith.constant dense<0.000000e+00> : vector<16x256xf32>
    %70 = tpu.matmul %50, %69, %cst_24 {dimension_numbers = #tpu.dot_dimension_numbers<[1], [0], [0], [1], [0, 0, 1, 1], [], []>, precision = #tpu.contract_precision<fp32>} : vector<16x128xf32>, vector<128x256xf32>, vector<16x256xf32> -> vector<16x256xf32>
    %71 = vector.extract_strided_slice %70 {offsets = [0, 0], sizes = [16, 128], strides = [1, 1]} : vector<16x256xf32> to vector<16x128xf32>
    %72 = vector.extract_strided_slice %70 {offsets = [0, 128], sizes = [16, 128], strides = [1, 1]} : vector<16x256xf32> to vector<16x128xf32>
    %c0_25 = arith.constant 0 : index
    %c0_26 = arith.constant 0 : index
    %c0_27 = arith.constant 0 : index
    %73 = vector.load %arg6[%c0_25, %c0_26, %c0_27] : memref<1x16x512xf32, #tpu.memory_space<vmem>>, vector<1x16x128xf32>
    %74 = vector.shape_cast %73 : vector<1x16x128xf32> to vector<16x128xf32>
    %75 = vector.shape_cast %1 : vector<16x128xf32> to vector<1x16x128xf32>
    tpu.vector_store %arg6[%c0_25, %c0_26, %c0_27], %75 {strides = array<i32>} : memref<1x16x512xf32, #tpu.memory_space<vmem>>, vector<1x16x128xf32>,
    %c0_28 = arith.constant 0 : index
    %c0_29 = arith.constant 0 : index
    %c128 = arith.constant 128 : index
    %76 = vector.load %arg6[%c0_28, %c0_29, %c128] : memref<1x16x512xf32, #tpu.memory_space<vmem>>, vector<1x16x128xf32>
    %77 = vector.shape_cast %76 : vector<1x16x128xf32> to vector<16x128xf32>
    %78 = vector.shape_cast %71 : vector<16x128xf32> to vector<1x16x128xf32>
    tpu.vector_store %arg6[%c0_28, %c0_29, %c128], %78 {strides = array<i32>} : memref<1x16x512xf32, #tpu.memory_space<vmem>>, vector<1x16x128xf32>,
    %79 = arith.mulf %1, %71 : vector<16x128xf32>
    %c0_30 = arith.constant 0 : index
    %c0_31 = arith.constant 0 : index
    %c256 = arith.constant 256 : index
    %80 = vector.load %arg6[%c0_30, %c0_31, %c256] : memref<1x16x512xf32, #tpu.memory_space<vmem>>, vector<1x16x128xf32>
    %81 = vector.shape_cast %80 : vector<1x16x128xf32> to vector<16x128xf32>
    %82 = vector.shape_cast %79 : vector<16x128xf32> to vector<1x16x128xf32>
    tpu.vector_store %arg6[%c0_30, %c0_31, %c256], %82 {strides = array<i32>} : memref<1x16x512xf32, #tpu.memory_space<vmem>>, vector<1x16x128xf32>,
    %83 = arith.mulf %1, %72 : vector<16x128xf32>
    %c0_32 = arith.constant 0 : index
    %c0_33 = arith.constant 0 : index
    %c384 = arith.constant 384 : index
    %84 = vector.load %arg6[%c0_32, %c0_33, %c384] : memref<1x16x512xf32, #tpu.memory_space<vmem>>, vector<1x16x128xf32>
    %85 = vector.shape_cast %84 : vector<1x16x128xf32> to vector<16x128xf32>
    %86 = vector.shape_cast %83 : vector<16x128xf32> to vector<1x16x128xf32>
    tpu.vector_store %arg6[%c0_32, %c0_33, %c384], %86 {strides = array<i32>} : memref<1x16x512xf32, #tpu.memory_space<vmem>>, vector<1x16x128xf32>,
    return
  }
  func.func @transform_0(%arg0: i32) -> (i32, i32, i32) {
    %c0_i32 = arith.constant 0 : i32
    %c0_i32_0 = arith.constant 0 : i32
    %c0_i32_1 = arith.constant 0 : i32
    return %arg0, %c0_i32, %c0_i32_0 : i32, i32, i32
  }
  func.func @transform_1(%arg0: i32) -> (i32, i32, i32) {
    %c0_i32 = arith.constant 0 : i32
    %c0_i32_0 = arith.constant 0 : i32
    %c0_i32_1 = arith.constant 0 : i32
    return %arg0, %c0_i32, %c0_i32_0 : i32, i32, i32
  }
  func.func @transform_2(%arg0: i32) -> (i32, i32, i32) {
    %c0_i32 = arith.constant 0 : i32
    %c0_i32_0 = arith.constant 0 : i32
    %c0_i32_1 = arith.constant 0 : i32
    return %arg0, %c0_i32, %c0_i32_0 : i32, i32, i32
  }
  func.func @transform_3(%arg0: i32) -> (i32, i32, i32) {
    %c0_i32 = arith.constant 0 : i32
    %c0_i32_0 = arith.constant 0 : i32
    %c0_i32_1 = arith.constant 0 : i32
    return %arg0, %c0_i32, %c0_i32_0 : i32, i32, i32
  }
  func.func @transform_4(%arg0: i32) -> (i32, i32) {
    %c0_i32 = arith.constant 0 : i32
    %c0_i32_0 = arith.constant 0 : i32
    %c0_i32_1 = arith.constant 0 : i32
    return %c0_i32, %c0_i32_0 : i32, i32
  }
  func.func @transform_5(%arg0: i32) -> (i32, i32, i32) {
    %c0_i32 = arith.constant 0 : i32
    %c0_i32_0 = arith.constant 0 : i32
    %c0_i32_1 = arith.constant 0 : i32
    return %arg0, %c0_i32, %c0_i32_0 : i32, i32, i32
  }
}

</mosaic_0001>

<llo_original>
// kernel: tpu_custom_call.1
$region0: #{tpu_custom_call.1}
  #allocation0 [shape = 'u32[]', space=smem, size = 0x4, offset = 0x4, fixed_abs, tag = 'smem constant byte address 0x4 - core index']
  #allocation1 [shape = 'u32[72,128]{1,0:T(1,128)}', space=vmem, size = 0x9000, scoped, tag = 'internal scratch']
  %s0 = inlined_call_operand.vmem [shape: f32[2,16,128], index: 0, kind: input, shape index: {}]
  %s1 = inlined_call_operand.hbm [shape: f32[2,128,128], index: 1, kind: input, shape index: {}]
  %s2 = inlined_call_operand.vmem [shape: s32[2,16,1], index: 2, kind: input, shape index: {}]
  %s3 = inlined_call_operand.hbm [shape: s32[2,1,128], index: 3, kind: input, shape index: {}]
  %s4 = inlined_call_operand.vmem [shape: f32[4,128], index: 4, kind: input, shape index: {}]
  %s5 = inlined_call_operand.hbm [shape: f32[2,16,512], index: 5, kind: output, shape index: {}]
  %s6 = sld [smem:[#allocation0]]
  $region61: #{tpu_custom_call.1} parent=0
    _
  %s8 = ssub.s32 1, %s6
  %s9 = scalar_select 0, %s8, %s6
  $region1: #{tpu_custom_call.1} parent=0
    #allocation2 [shape = 'u8[131072]{0}', space=vmem, size = 0x20000, scoped, tag = 'input window, operand 1']
    #allocation3 [shape = 's32[2]{0}', space=sflag, size = 0x8, scoped, tag = 'scoped memory for tpu_custom_call.1']
    #allocation4 [shape = 's32[2]{0}', space=sflag, size = 0x8, scoped, tag = 'scoped memory for tpu_custom_call.1']
    #allocation5 [shape = 'u8[1024]{0}', space=vmem, size = 0x400, scoped, tag = 'input window, operand 3']
    #allocation6 [shape = 's32[2]{0}', space=sflag, size = 0x8, scoped, tag = 'scoped memory for tpu_custom_call.1']
    #allocation7 [shape = 'u8[65536]{0}', space=vmem, size = 0x10000, scoped, tag = 'output window, operand 0']
    %10 = vsyncpa [#allocation3], 0
    %s11 = scalar_lea.sflag [#allocation3], 1
    %12 = vsyncpa %s11, 0
    %13 = vsyncpa [#allocation6], 0
    %s14 = scalar_lea.sflag [#allocation6], 1
    %15 = vsyncpa %s14, 0
    %16 = vsyncpa [#allocation4], 0
    %s17 = scalar_lea.sflag [#allocation4], 1
    %18 = vsyncpa %s17, 0
    loop: start=0, step=1, limit=4
    $region2: #{tpu_custom_call.1} parent=1 // loop_pre_header
      _
    $region3: #{tpu_custom_call.1} parent=1 // loop_header
      %s20 = sphi 0, %s24
      %p21 = scmp.ge.s32.totalorder %s20, 4
      %s30 = sphi 0, %s32
      %s33 = sphi 0, %s30
      %s34 = sphi 0, %s33
      %s50 = sphi 0, %s34
      %s56 = sphi 0, %s58
      %s59 = sphi 0, %s56
      %s60 = sphi 0, %s59
      %s76 = sphi 0, %s60
      %s82 = sphi 0, %s84
      %s85 = sphi 0, %s82
      %s86 = sphi 0, %s85
      %s102 = sphi 0, %s86
      %s108 = sphi 0, %s110
      %s111 = sphi 0, %s108
      %s112 = sphi 0, %s111
      %s128 = sphi 0, %s112
      %s132 = sphi 0, %s132
      %s134 = sphi 0, %s132
      %s135 = sphi 0, %s134
      %s149 = sphi 0, %s135
      %s155 = sphi 0, %s157
      %s158 = sphi 0, %s155
      %s159 = sphi 0, %s158
      %s175 = sphi 0, %s159
    $region4: #{tpu_custom_call.1} parent=1 // loop_header_branch
      %23 = sbr.rel (%p21) target = $region8
    $region5: #{tpu_custom_call.1} parent=1 // loop_body
      %s25 = ssub.s32 %s20, 1
      %s26 = ssub.s32 %s20, 2
      %s27 = sadd.s32 %s20, 1
      %s28 = ssub.s32 %s20, %s27
      %p29 = scmp.eq.s32.totalorder %s28, 0
      %s31 = sadd.s32 %s30, 1
      %s32 = scalar_select %p29, %s30, %s31
      %p35 = pneg %p29
      %p36 = scmp.eq.s32.totalorder %s20, 1
      %p37 = por %p35, %p36
      %p38 = scmp.ne.s32.totalorder %s30, %s33
      %p39 = scmp.eq.s32.totalorder %s20, 0
      %p40 = por %p38, %p39
      %p41 = scmp.ne.s32.totalorder %s30, %s33
      %p42 = scmp.eq.s32.totalorder %s25, 1
      %p43 = por %p41, %p42
      %p44 = scmp.ne.s32.totalorder %s33, %s34
      %p45 = scmp.eq.s32.totalorder %s25, 0
      %p46 = por %p44, %p45
      %p47 = scmp.ne.s32.totalorder %s33, %s34
      %p48 = scmp.eq.s32.totalorder %s26, 1
      %p49 = por %p47, %p48
      %p51 = scmp.ne.s32.totalorder %s34, %s50
      %p52 = scmp.eq.s32.totalorder %s26, 0
      %p53 = por %p51, %p52
      %s54 = ssub.s32 %s20, %s27
      %p55 = scmp.eq.s32.totalorder %s54, 0
      %s57 = sadd.s32 %s56, 1
      %s58 = scalar_select %p55, %s56, %s57
      %p61 = pneg %p55
      %p62 = scmp.eq.s32.totalorder %s20, 1
      %p63 = por %p61, %p62
      %p64 = scmp.ne.s32.totalorder %s56, %s59
      %p65 = scmp.eq.s32.totalorder %s20, 0
      %p66 = por %p64, %p65
      %p67 = scmp.ne.s32.totalorder %s56, %s59
      %p68 = scmp.eq.s32.totalorder %s25, 1
      %p69 = por %p67, %p68
      %p70 = scmp.ne.s32.totalorder %s59, %s60
      %p71 = scmp.eq.s32.totalorder %s25, 0
      %p72 = por %p70, %p71
      %p73 = scmp.ne.s32.totalorder %s59, %s60
      %p74 = scmp.eq.s32.totalorder %s26, 1
      %p75 = por %p73, %p74
      %p77 = scmp.ne.s32.totalorder %s60, %s76
      %p78 = scmp.eq.s32.totalorder %s26, 0
      %p79 = por %p77, %p78
      %s80 = ssub.s32 %s20, %s27
      %p81 = scmp.eq.s32.totalorder %s80, 0
      %s83 = sadd.s32 %s82, 1
      %s84 = scalar_select %p81, %s82, %s83
      %p87 = pneg %p81
      %p88 = scmp.eq.s32.totalorder %s20, 1
      %p89 = por %p87, %p88
      %p90 = scmp.ne.s32.totalorder %s82, %s85
      %p91 = scmp.eq.s32.totalorder %s20, 0
      %p92 = por %p90, %p91
      %p93 = scmp.ne.s32.totalorder %s82, %s85
      %p94 = scmp.eq.s32.totalorder %s25, 1
      %p95 = por %p93, %p94
      %p96 = scmp.ne.s32.totalorder %s85, %s86
      %p97 = scmp.eq.s32.totalorder %s25, 0
      %p98 = por %p96, %p97
      %p99 = scmp.ne.s32.totalorder %s85, %s86
      %p100 = scmp.eq.s32.totalorder %s26, 1
      %p101 = por %p99, %p100
      %p103 = scmp.ne.s32.totalorder %s86, %s102
      %p104 = scmp.eq.s32.totalorder %s26, 0
      %p105 = por %p103, %p104
      %s106 = ssub.s32 %s20, %s27
      %p107 = scmp.eq.s32.totalorder %s106, 0
      %s109 = sadd.s32 %s108, 1
      %s110 = scalar_select %p107, %s108, %s109
      %p113 = pneg %p107
      %p114 = scmp.eq.s32.totalorder %s20, 1
      %p115 = por %p113, %p114
      %p116 = scmp.ne.s32.totalorder %s108, %s111
      %p117 = scmp.eq.s32.totalorder %s20, 0
      %p118 = por %p116, %p117
      %p119 = scmp.ne.s32.totalorder %s108, %s111
      %p120 = scmp.eq.s32.totalorder %s25, 1
      %p121 = por %p119, %p120
      %p122 = scmp.ne.s32.totalorder %s111, %s112
      %p123 = scmp.eq.s32.totalorder %s25, 0
      %p124 = por %p122, %p123
      %p125 = scmp.ne.s32.totalorder %s111, %s112
      %p126 = scmp.eq.s32.totalorder %s26, 1
      %p127 = por %p125, %p126
      %p129 = scmp.ne.s32.totalorder %s112, %s128
      %p130 = scmp.eq.s32.totalorder %s26, 0
      %p131 = por %p129, %p130
      %s133 = sadd.s32 %s132, 1
      %p136 = scmp.eq.s32.totalorder %s20, 1
      %p137 = scmp.ne.s32.totalorder %s132, %s134
      %p138 = scmp.eq.s32.totalorder %s20, 0
      %p139 = por %p137, %p138
      %p140 = scmp.ne.s32.totalorder %s132, %s134
      %p141 = scmp.eq.s32.totalorder %s25, 1
      %p142 = por %p140, %p141
      %p143 = scmp.ne.s32.totalorder %s134, %s135
      %p144 = scmp.eq.s32.totalorder %s25, 0
      %p145 = por %p143, %p144
      %p146 = scmp.ne.s32.totalorder %s134, %s135
      %p147 = scmp.eq.s32.totalorder %s26, 1
      %p148 = por %p146, %p147
      %p150 = scmp.ne.s32.totalorder %s135, %s149
      %p151 = scmp.eq.s32.totalorder %s26, 0
      %p152 = por %p150, %p151
      %s153 = ssub.s32 %s20, %s27
      %p154 = scmp.eq.s32.totalorder %s153, 0
      %s156 = sadd.s32 %s155, 1
      %s157 = scalar_select %p154, %s155, %s156
      %p160 = pneg %p154
      %p161 = scmp.eq.s32.totalorder %s20, 1
      %p162 = por %p160, %p161
      %p163 = scmp.ne.s32.totalorder %s155, %s158
      %p164 = scmp.eq.s32.totalorder %s20, 0
      %p165 = por %p163, %p164
      %p166 = scmp.ne.s32.totalorder %s155, %s158
      %p167 = scmp.eq.s32.totalorder %s25, 1
      %p168 = por %p166, %p167
      %p169 = scmp.ne.s32.totalorder %s158, %s159
      %p170 = scmp.eq.s32.totalorder %s25, 0
      %p171 = por %p169, %p170
      %p172 = scmp.ne.s32.totalorder %s158, %s159
      %p173 = scmp.eq.s32.totalorder %s26, 1
      %p174 = por %p172, %p173
      %p176 = scmp.ne.s32.totalorder %s159, %s175
      %p177 = scmp.eq.s32.totalorder %s26, 0
      %p178 = por %p176, %p177
      %p179 = scmp.le.s32.totalorder 1, %s20
      %p180 = scmp.lt.s32.totalorder %s20, 3
      %p181 = pnand %p179, %p180
      %p182 = pneg %p181
      // Predicated region
      $region9: #{tpu_custom_call.1} parent=5 // pred_check
        _
      $region10: #{tpu_custom_call.1} parent=5 // pred_check_branch
        %184 = sbr.rel (%p181) target = $region12
      $region11: #{tpu_custom_call.1} parent=5 // pred_region
        %s185 = ssub.s32 %s20, 1
        // Predicated region
        $region13: #{tpu_custom_call.1} parent=11 // pred_check
          %p186 = pneg %p145
        $region14: #{tpu_custom_call.1} parent=11 // pred_check_branch
          %188 = sbr.rel (%p186) target = $region16
        $region15: #{tpu_custom_call.1} parent=11 // pred_region
          _
        $region16: #{tpu_custom_call.1} parent=11 // pred_fallthru
          _
      $region12: #{tpu_custom_call.1} parent=5 // pred_fallthru
        _
      %p189 = scmp.lt.s32.totalorder %s20, 2
      // Predicated region
      $region17: #{tpu_custom_call.1} parent=5 // pred_check
        %p190 = pneg %p189
      $region18: #{tpu_custom_call.1} parent=5 // pred_check_branch
        %192 = sbr.rel (%p190) target = $region20
      $region19: #{tpu_custom_call.1} parent=5 // pred_region
        // Predicated region
        $region21: #{tpu_custom_call.1} parent=19 // pred_check
          %p193 = pneg %p40
        $region22: #{tpu_custom_call.1} parent=19 // pred_check_branch
          %195 = sbr.rel (%p193) target = $region24
        $region23: #{tpu_custom_call.1} parent=19 // pred_region
          %p196 = scmp.lt.s32.totalorder %s20, 1
          %s197 = scalar_select %p196, %s20, 1
          %s198 = smul.addr %s197, 2
          %s199 = smul.addr %s198, 8
          %s200 = scalar_lea.vmem %s0, %s199
        $region24: #{tpu_custom_call.1} parent=19 // pred_fallthru
          _
        // Predicated region
        $region25: #{tpu_custom_call.1} parent=19 // pred_check
          %p201 = pneg %p66
        $region26: #{tpu_custom_call.1} parent=19 // pred_check_branch
          %203 = sbr.rel (%p201) target = $region28
        $region27: #{tpu_custom_call.1} parent=19 // pred_region
          %s204 = sand.u32 %s56, 1
          %s205 = scalar_lea.sflag [#allocation3], %s204
          %s206 = sand.u32 %s56, 1
          %s207 = smul.addr %s206, 128
          %s208 = scalar_lea.vmem [#allocation2], %s207
          %210 = vsyncadd %s205, 0
          %s211 = smul.addr %s20, 16
          %s212 = smul.addr %s211, 8
          %s213 = scalar_lea.hbm %s1, %s212
          %s214 = sshll.u32 %s213, 4
          %s215 = int_to_ptr.hbm [resolvable:$true] %s214
          %s216 = sshll.u32 %s208, 4
          %s217 = int_to_ptr.vmem [resolvable:$true] %s216
          %222 = dma.hbm_to_vmem [thread:$0]  %s215, 2048, %s217, %s205, 128, 128, 8
        $region28: #{tpu_custom_call.1} parent=19 // pred_fallthru
          _
        // Predicated region
        $region29: #{tpu_custom_call.1} parent=19 // pred_check
          %p223 = pneg %p92
        $region30: #{tpu_custom_call.1} parent=19 // pred_check_branch
          %225 = sbr.rel (%p223) target = $region32
        $region31: #{tpu_custom_call.1} parent=19 // pred_region
          %p226 = scmp.lt.s32.totalorder %s20, 1
          %s227 = scalar_select %p226, %s20, 1
          %s228 = smul.addr %s227, 2
          %s229 = smul.addr %s228, 8
          %s230 = scalar_lea.vmem %s2, %s229
        $region32: #{tpu_custom_call.1} parent=19 // pred_fallthru
          _
        // Predicated region
        $region33: #{tpu_custom_call.1} parent=19 // pred_check
          %p231 = pneg %p118
        $region34: #{tpu_custom_call.1} parent=19 // pred_check_branch
          %233 = sbr.rel (%p231) target = $region36
        $region35: #{tpu_custom_call.1} parent=19 // pred_region
          %s234 = sand.u32 %s108, 1
          %s235 = scalar_lea.sflag [#allocation6], %s234
          %s236 = sand.u32 %s108, 1
          %s237 = scalar_lea.vmem [#allocation5], %s236
          %239 = vsyncadd %s235, 0
          %s240 = scalar_lea.hbm %s3, %s20
          %s242 = sshll.u32 %s240, 4
          %s243 = int_to_ptr.hbm [resolvable:$true] %s242
          %s244 = sshll.u32 %s237, 4
          %s245 = int_to_ptr.vmem [resolvable:$true] %s244
          %247 = dma.hbm_to_vmem [thread:$0]  %s243, 16, %s245, %s235
        $region36: #{tpu_custom_call.1} parent=19 // pred_fallthru
          _
      $region20: #{tpu_custom_call.1} parent=5 // pred_fallthru
        _
      %p248 = scmp.le.s32.totalorder 1, %s20
      %p249 = scmp.lt.s32.totalorder %s20, 3
      %p250 = pnand %p248, %p249
      %p251 = pneg %p250
      // Predicated region
      $region37: #{tpu_custom_call.1} parent=5 // pred_check
        _
      $region38: #{tpu_custom_call.1} parent=5 // pred_check_branch
        %253 = sbr.rel (%p250) target = $region40
      $region39: #{tpu_custom_call.1} parent=5 // pred_region
        %s254 = ssub.s32 %s20, 1
        %s255 = sand.u32 %s59, 1
        %s256 = scalar_lea.sflag [#allocation3], %s255
        %s257 = sand.u32 %s59, 1
        %s258 = smul.addr %s257, 128
        %s259 = scalar_lea.vmem [#allocation2], %s258
        // Predicated region
        $region41: #{tpu_custom_call.1} parent=39 // pred_check
          %p260 = pneg %p72
        $region42: #{tpu_custom_call.1} parent=39 // pred_check_branch
          %262 = sbr.rel (%p260) target = $region44
        $region43: #{tpu_custom_call.1} parent=39 // pred_region
          %264 = dma.done %s256, 2048
        $region44: #{tpu_custom_call.1} parent=39 // pred_fallthru
          _
        %s265 = sand.u32 %s111, 1
        %s266 = scalar_lea.sflag [#allocation6], %s265
        %s267 = sand.u32 %s111, 1
        %s268 = scalar_lea.vmem [#allocation5], %s267
        // Predicated region
        $region45: #{tpu_custom_call.1} parent=39 // pred_check
          %p269 = pneg %p124
        $region46: #{tpu_custom_call.1} parent=39 // pred_check_branch
          %271 = sbr.rel (%p269) target = $region48
        $region47: #{tpu_custom_call.1} parent=39 // pred_region
          %273 = dma.done %s266, 16
        $region48: #{tpu_custom_call.1} parent=39 // pred_fallthru
          _
        %p274 = scmp.lt.s32.totalorder %s25, 1
        %s275 = scalar_select %p274, %s25, 1
        %s276 = smul.addr %s275, 2
        %s277 = smul.addr %s276, 8
        %s278 = scalar_lea.vmem %s0, %s277
        %p279 = pneg %p46
        %p280 = pneg %p43
        %s281 = sand.u32 %s59, 1
        %s282 = scalar_lea.sflag [#allocation3], %s281
        %s283 = sand.u32 %s59, 1
        %s284 = smul.addr %s283, 128
        %s285 = scalar_lea.vmem [#allocation2], %s284
        %p286 = pneg %p72
        %p287 = pneg %p69
        %p288 = scmp.lt.s32.totalorder %s25, 1
        %s289 = scalar_select %p288, %s25, 1
        %s290 = smul.addr %s289, 2
        %s291 = smul.addr %s290, 8
        %s292 = scalar_lea.vmem %s2, %s291
        %p293 = pneg %p98
        %p294 = pneg %p95
        %s295 = sand.u32 %s111, 1
        %s296 = scalar_lea.sflag [#allocation6], %s295
        %s297 = sand.u32 %s111, 1
        %s298 = scalar_lea.vmem [#allocation5], %s297
        %p299 = pneg %p124
        %p300 = pneg %p121
        %p301 = pneg %p145
        %p302 = pneg %p142
        %p303 = pneg %p171
        %p304 = pneg %p168
        %s305 = sand.u32 %s158, 1
        %s306 = scalar_lea.sflag [#allocation4], %s305
        %s307 = sand.u32 %s158, 1
        %s308 = smul.addr %s307, 64
        %s309 = scalar_lea.vmem [#allocation7], %s308
        %p310 = scmp.lt.s32.totalorder %s25, 1
        %s311 = scalar_select %p310, %s25, 1
        %s312 = smul.addr %s311, 2
        %s313 = smul.addr %s312, 8
        %s314 = scalar_lea.vmem %s0, %s313
        %p315 = scmp.lt.s32.totalorder %s25, 1
        %s316 = scalar_select %p315, %s25, 1
        %s317 = smul.addr %s316, 2
        %s318 = smul.addr %s317, 8
        %s319 = scalar_lea.vmem %s2, %s318
        %v320 = vld [vmem:[%s314] sm:$0xff]
        %v321 = vld [vmem:[%s314 + $0x8] sm:$0xff]
        %v322 = vld [vmem:[%s259] sm:$0xff]
        %v323 = vld [vmem:[%s259 + $0x8] sm:$0xff]
        %v324 = vld [vmem:[%s259 + $0x10] sm:$0xff]
        %v325 = vld [vmem:[%s259 + $0x18] sm:$0xff]
        %v326 = vld [vmem:[%s259 + $0x20] sm:$0xff]
        %v327 = vld [vmem:[%s259 + $0x28] sm:$0xff]
        %v328 = vld [vmem:[%s259 + $0x30] sm:$0xff]
        %v329 = vld [vmem:[%s259 + $0x38] sm:$0xff]
        %v330 = vld [vmem:[%s259 + $0x40] sm:$0xff]
        %v331 = vld [vmem:[%s259 + $0x48] sm:$0xff]
        %v332 = vld [vmem:[%s259 + $0x50] sm:$0xff]
        %v333 = vld [vmem:[%s259 + $0x58] sm:$0xff]
        %v334 = vld [vmem:[%s259 + $0x60] sm:$0xff]
        %v335 = vld [vmem:[%s259 + $0x68] sm:$0xff]
        %v336 = vld [vmem:[%s259 + $0x70] sm:$0xff]
        %v337 = vld [vmem:[%s259 + $0x78] sm:$0xff]
        %v338 = vld [vmem:[%s319] sm:$0xff]
        %v339 = vld [vmem:[%s319 + $0x8] sm:$0xff]
        %vm340 = vcmp.gt.s32.totalorder %v338, 0
        %vm341 = vcmp.gt.s32.totalorder %v339, 0
        %v342 = vld [vmem:[%s268] sm:$0x1]
        %vm343 = vcmp.gt.s32.totalorder %v342, 0
        %v344 = vsel %vm340, 1, 0
        %v345 = vsel %vm341, 1, 0
        %v346 = vcvt.s32.f32 %v344
        %v347 = vcvt.s32.f32 %v345
        %v348 = vsel %vm343, 1, 0
        %v349 = vcvt.s32.f32 %v348
        %v350 = vld [vmem:[%s4] sm:$0xf]
        %v351 = vperm.slane %v350, 2
        %v352 = vmul.f32 %v320, %v351
        %v353 = vmul.f32 %v321, %v351
        %v354 = vperm.slane %v350, 1
        %v355 = vadd.f32 %v352, %v354
        %v356 = vadd.f32 %v353, %v354
        %v357 = vperm.slane %v350, 0
        %v358 = vmul.f32 %v320, %v357
        %v359 = vmul.f32 %v321, %v357
        %360 = vadd.xlane.f32.xlu0 %v358
        %v361 = vpop.xlane.xlu0 %360
        %362 = vadd.xlane.f32.xlu0 %v359
        %v363 = vpop.xlane.xlu0 %362
        %v364 = vand.u32 %v337, 4294901760
        %365 = vmatpush.xpose.msra.mxu0 %v364
        %v366 = vand.u32 %v336, 4294901760
        %367 = vmatpush.xpose.msra.mxu0 %v366
        %v368 = vand.u32 %v335, 4294901760
        %369 = vmatpush.xpose.msra.mxu0 %v368
        %v370 = vand.u32 %v334, 4294901760
        %371 = vmatpush.xpose.msra.mxu0 %v370
        %v372 = vand.u32 %v333, 4294901760
        %373 = vmatpush.xpose.msra.mxu0 %v372
        %v374 = vand.u32 %v332, 4294901760
        %375 = vmatpush.xpose.msra.mxu0 %v374
        %v376 = vand.u32 %v331, 4294901760
        %377 = vmatpush.xpose.msra.mxu0 %v376
        %v378 = vand.u32 %v330, 4294901760
        %379 = vmatpush.xpose.msra.mxu0 %v378
        %v380 = vand.u32 %v329, 4294901760
        %381 = vmatpush.xpose.msra.mxu0 %v380
        %v382 = vand.u32 %v328, 4294901760
        %383 = vmatpush.xpose.msra.mxu0 %v382
        %v384 = vand.u32 %v327, 4294901760
        %385 = vmatpush.xpose.msra.mxu0 %v384
        %v386 = vand.u32 %v326, 4294901760
        %387 = vmatpush.xpose.msra.mxu0 %v386
        %v388 = vand.u32 %v325, 4294901760
        %389 = vmatpush.xpose.msra.mxu0 %v388
        %v390 = vand.u32 %v324, 4294901760
        %391 = vmatpush.xpose.msra.mxu0 %v390
        %v392 = vand.u32 %v323, 4294901760
        %393 = vmatpush.xpose.msra.mxu0 %v392
        %v394 = vand.u32 %v322, 4294901760
        %395 = vmatpush.xpose.msra.mxu0 %v394
        %v396 = vand.u32 %v355, 4294901760
        %v397 = vsub.f32 %v355, %v396
        %v398 = vand.u32 %v397, 4294901760
        %v399 = vsub.f32 %v397, %v398
        %v400 = vand.u32 %v399, 4294901760
        %401 = vmatmul.f32.gmra.mxu0 %v400
        %v402 = vpop.f32.mrf.mxu0
        %v403 = vadd.f32 %v361, %v402
        %v404 = vand.u32 %v356, 4294901760
        %v405 = vsub.f32 %v356, %v404
        %v406 = vand.u32 %v405, 4294901760
        %v407 = vsub.f32 %v405, %v406
        %v408 = vand.u32 %v407, 4294901760
        %409 = vmatmul.f32.gmra.mxu0 %v408
        %v410 = vpop.f32.mrf.mxu0
        %v411 = vadd.f32 %v363, %v410
        %412 = vdwg.mxu0
        %v413 = vand.u32 %v337, 4294901760
        %v414 = vsub.f32 %v337, %v413
        %v415 = vand.u32 %v414, 4294901760
        %v416 = vsub.f32 %v414, %v415
        %v417 = vand.u32 %v416, 4294901760
        %418 = vmatpush.xpose.msra.mxu0 %v417
        %v419 = vand.u32 %v336, 4294901760
        %v420 = vsub.f32 %v336, %v419
        %v421 = vand.u32 %v420, 4294901760
        %v422 = vsub.f32 %v420, %v421
        %v423 = vand.u32 %v422, 4294901760
        %424 = vmatpush.xpose.msra.mxu0 %v423
        %v425 = vand.u32 %v335, 4294901760
        %v426 = vsub.f32 %v335, %v425
        %v427 = vand.u32 %v426, 4294901760
        %v428 = vsub.f32 %v426, %v427
        %v429 = vand.u32 %v428, 4294901760
        %430 = vmatpush.xpose.msra.mxu0 %v429
        %v431 = vand.u32 %v334, 4294901760
        %v432 = vsub.f32 %v334, %v431
        %v433 = vand.u32 %v432, 4294901760
        %v434 = vsub.f32 %v432, %v433
        %v435 = vand.u32 %v434, 4294901760
        %436 = vmatpush.xpose.msra.mxu0 %v435
        %v437 = vand.u32 %v333, 4294901760
        %v438 = vsub.f32 %v333, %v437
        %v439 = vand.u32 %v438, 4294901760
        %v440 = vsub.f32 %v438, %v439
        %v441 = vand.u32 %v440, 4294901760
        %442 = vmatpush.xpose.msra.mxu0 %v441
        %v443 = vand.u32 %v332, 4294901760
        %v444 = vsub.f32 %v332, %v443
        %v445 = vand.u32 %v444, 4294901760
        %v446 = vsub.f32 %v444, %v445
        %v447 = vand.u32 %v446, 4294901760
        %448 = vmatpush.xpose.msra.mxu0 %v447
        %v449 = vand.u32 %v331, 4294901760
        %v450 = vsub.f32 %v331, %v449
        %v451 = vand.u32 %v450, 4294901760
        %v452 = vsub.f32 %v450, %v451
        %v453 = vand.u32 %v452, 4294901760
        %454 = vmatpush.xpose.msra.mxu0 %v453
        %v455 = vand.u32 %v330, 4294901760
        %v456 = vsub.f32 %v330, %v455
        %v457 = vand.u32 %v456, 4294901760
        %v458 = vsub.f32 %v456, %v457
        %v459 = vand.u32 %v458, 4294901760
        %460 = vmatpush.xpose.msra.mxu0 %v459
        %v461 = vand.u32 %v329, 4294901760
        %v462 = vsub.f32 %v329, %v461
        %v463 = vand.u32 %v462, 4294901760
        %v464 = vsub.f32 %v462, %v463
        %v465 = vand.u32 %v464, 4294901760
        %466 = vmatpush.xpose.msra.mxu0 %v465
        %v467 = vand.u32 %v328, 4294901760
        %v468 = vsub.f32 %v328, %v467
        %v469 = vand.u32 %v468, 4294901760
        %v470 = vsub.f32 %v468, %v469
        %v471 = vand.u32 %v470, 4294901760
        %472 = vmatpush.xpose.msra.mxu0 %v471
        %v473 = vand.u32 %v327, 4294901760
        %v474 = vsub.f32 %v327, %v473
        %v475 = vand.u32 %v474, 4294901760
        %v476 = vsub.f32 %v474, %v475
        %v477 = vand.u32 %v476, 4294901760
        %478 = vmatpush.xpose.msra.mxu0 %v477
        %v479 = vand.u32 %v326, 4294901760
        %v480 = vsub.f32 %v326, %v479
        %v481 = vand.u32 %v480, 4294901760
        %v482 = vsub.f32 %v480, %v481
        %v483 = vand.u32 %v482, 4294901760
        %484 = vmatpush.xpose.msra.mxu0 %v483
        %v485 = vand.u32 %v325, 4294901760
        %v486 = vsub.f32 %v325, %v485
        %v487 = vand.u32 %v486, 4294901760
        %v488 = vsub.f32 %v486, %v487
        %v489 = vand.u32 %v488, 4294901760
        %490 = vmatpush.xpose.msra.mxu0 %v489
        %v491 = vand.u32 %v324, 4294901760
        %v492 = vsub.f32 %v324, %v491
        %v493 = vand.u32 %v492, 4294901760
        %v494 = vsub.f32 %v492, %v493
        %v495 = vand.u32 %v494, 4294901760
        %496 = vmatpush.xpose.msra.mxu0 %v495
        %v497 = vand.u32 %v323, 4294901760
        %v498 = vsub.f32 %v323, %v497
        %v499 = vand.u32 %v498, 4294901760
        %v500 = vsub.f32 %v498, %v499
        %v501 = vand.u32 %v500, 4294901760
        %502 = vmatpush.xpose.msra.mxu0 %v501
        %v503 = vand.u32 %v322, 4294901760
        %v504 = vsub.f32 %v322, %v503
        %v505 = vand.u32 %v504, 4294901760
        %v506 = vsub.f32 %v504, %v505
        %v507 = vand.u32 %v506, 4294901760
        %508 = vmatpush.xpose.msra.mxu0 %v507
        %v509 = vand.u32 %v355, 4294901760
        %510 = vmatmul.f32.gmra.mxu0 %v509
        %v511 = vpop.f32.mrf.mxu0
        %v512 = vadd.f32 %v403, %v511
        %v513 = vand.u32 %v356, 4294901760
        %514 = vmatmul.f32.gmra.mxu0 %v513
        %v515 = vpop.f32.mrf.mxu0
        %v516 = vadd.f32 %v411, %v515
        %517 = vdwg.mxu0
        %v518 = vand.u32 %v337, 4294901760
        %v519 = vsub.f32 %v337, %v518
        %520 = vmatpush.xpose.msra.mxu0 %v519
        %v521 = vand.u32 %v336, 4294901760
        %v522 = vsub.f32 %v336, %v521
        %523 = vmatpush.xpose.msra.mxu0 %v522
        %v524 = vand.u32 %v335, 4294901760
        %v525 = vsub.f32 %v335, %v524
        %526 = vmatpush.xpose.msra.mxu0 %v525
        %v527 = vand.u32 %v334, 4294901760
        %v528 = vsub.f32 %v334, %v527
        %529 = vmatpush.xpose.msra.mxu0 %v528
        %v530 = vand.u32 %v333, 4294901760
        %v531 = vsub.f32 %v333, %v530
        %532 = vmatpush.xpose.msra.mxu0 %v531
        %v533 = vand.u32 %v332, 4294901760
        %v534 = vsub.f32 %v332, %v533
        %535 = vmatpush.xpose.msra.mxu0 %v534
        %v536 = vand.u32 %v331, 4294901760
        %v537 = vsub.f32 %v331, %v536
        %538 = vmatpush.xpose.msra.mxu0 %v537
        %v539 = vand.u32 %v330, 4294901760
        %v540 = vsub.f32 %v330, %v539
        %541 = vmatpush.xpose.msra.mxu0 %v540
        %v542 = vand.u32 %v329, 4294901760
        %v543 = vsub.f32 %v329, %v542
        %544 = vmatpush.xpose.msra.mxu0 %v543
        %v545 = vand.u32 %v328, 4294901760
        %v546 = vsub.f32 %v328, %v545
        %547 = vmatpush.xpose.msra.mxu0 %v546
        %v548 = vand.u32 %v327, 4294901760
        %v549 = vsub.f32 %v327, %v548
        %550 = vmatpush.xpose.msra.mxu0 %v549
        %v551 = vand.u32 %v326, 4294901760
        %v552 = vsub.f32 %v326, %v551
        %553 = vmatpush.xpose.msra.mxu0 %v552
        %v554 = vand.u32 %v325, 4294901760
        %v555 = vsub.f32 %v325, %v554
        %556 = vmatpush.xpose.msra.mxu0 %v555
        %v557 = vand.u32 %v324, 4294901760
        %v558 = vsub.f32 %v324, %v557
        %559 = vmatpush.xpose.msra.mxu0 %v558
        %v560 = vand.u32 %v323, 4294901760
        %v561 = vsub.f32 %v323, %v560
        %562 = vmatpush.xpose.msra.mxu0 %v561
        %v563 = vand.u32 %v322, 4294901760
        %v564 = vsub.f32 %v322, %v563
        %565 = vmatpush.xpose.msra.mxu0 %v564
        %v566 = vand.u32 %v355, 4294901760
        %v567 = vsub.f32 %v355, %v566
        %568 = vmatmul.f32.gmra.mxu0 %v567
        %v569 = vpop.f32.mrf.mxu0
        %v570 = vadd.f32 %v512, %v569
        %v571 = vand.u32 %v356, 4294901760
        %v572 = vsub.f32 %v356, %v571
        %573 = vmatmul.f32.gmra.mxu0 %v572
        %v574 = vpop.f32.mrf.mxu0
        %v575 = vadd.f32 %v516, %v574
        %576 = vdwg.mxu0
        %v577 = vand.u32 %v337, 4294901760
        %578 = vmatpush.xpose.msra.mxu0 %v577
        %v579 = vand.u32 %v336, 4294901760
        %580 = vmatpush.xpose.msra.mxu0 %v579
        %v581 = vand.u32 %v335, 4294901760
        %582 = vmatpush.xpose.msra.mxu0 %v581
        %v583 = vand.u32 %v334, 4294901760
        %584 = vmatpush.xpose.msra.mxu0 %v583
        %v585 = vand.u32 %v333, 4294901760
        %586 = vmatpush.xpose.msra.mxu0 %v585
        %v587 = vand.u32 %v332, 4294901760
        %588 = vmatpush.xpose.msra.mxu0 %v587
        %v589 = vand.u32 %v331, 4294901760
        %590 = vmatpush.xpose.msra.mxu0 %v589
        %v591 = vand.u32 %v330, 4294901760
        %592 = vmatpush.xpose.msra.mxu0 %v591
        %v593 = vand.u32 %v329, 4294901760
        %594 = vmatpush.xpose.msra.mxu0 %v593
        %v595 = vand.u32 %v328, 4294901760
        %596 = vmatpush.xpose.msra.mxu0 %v595
        %v597 = vand.u32 %v327, 4294901760
        %598 = vmatpush.xpose.msra.mxu0 %v597
        %v599 = vand.u32 %v326, 4294901760
        %600 = vmatpush.xpose.msra.mxu0 %v599
        %v601 = vand.u32 %v325, 4294901760
        %602 = vmatpush.xpose.msra.mxu0 %v601
        %v603 = vand.u32 %v324, 4294901760
        %604 = vmatpush.xpose.msra.mxu0 %v603
        %v605 = vand.u32 %v323, 4294901760
        %606 = vmatpush.xpose.msra.mxu0 %v605
        %v607 = vand.u32 %v322, 4294901760
        %608 = vmatpush.xpose.msra.mxu0 %v607
        %v609 = vand.u32 %v355, 4294901760
        %v610 = vsub.f32 %v355, %v609
        %v611 = vand.u32 %v610, 4294901760
        %612 = vmatmul.f32.gmra.mxu0 %v611
        %v613 = vpop.f32.mrf.mxu0
        %v614 = vadd.f32 %v570, %v613
        %v615 = vand.u32 %v356, 4294901760
        %v616 = vsub.f32 %v356, %v615
        %v617 = vand.u32 %v616, 4294901760
        %618 = vmatmul.f32.gmra.mxu0 %v617
        %v619 = vpop.f32.mrf.mxu0
        %v620 = vadd.f32 %v575, %v619
        %621 = vdwg.mxu0
        %v622 = vand.u32 %v337, 4294901760
        %v623 = vsub.f32 %v337, %v622
        %v624 = vand.u32 %v623, 4294901760
        %625 = vmatpush.xpose.msra.mxu0 %v624
        %v626 = vand.u32 %v336, 4294901760
        %v627 = vsub.f32 %v336, %v626
        %v628 = vand.u32 %v627, 4294901760
        %629 = vmatpush.xpose.msra.mxu0 %v628
        %v630 = vand.u32 %v335, 4294901760
        %v631 = vsub.f32 %v335, %v630
        %v632 = vand.u32 %v631, 4294901760
        %633 = vmatpush.xpose.msra.mxu0 %v632
        %v634 = vand.u32 %v334, 4294901760
        %v635 = vsub.f32 %v334, %v634
        %v636 = vand.u32 %v635, 4294901760
        %637 = vmatpush.xpose.msra.mxu0 %v636
        %v638 = vand.u32 %v333, 4294901760
        %v639 = vsub.f32 %v333, %v638
        %v640 = vand.u32 %v639, 4294901760
        %641 = vmatpush.xpose.msra.mxu0 %v640
        %v642 = vand.u32 %v332, 4294901760
        %v643 = vsub.f32 %v332, %v642
        %v644 = vand.u32 %v643, 4294901760
        %645 = vmatpush.xpose.msra.mxu0 %v644
        %v646 = vand.u32 %v331, 4294901760
        %v647 = vsub.f32 %v331, %v646
        %v648 = vand.u32 %v647, 4294901760
        %649 = vmatpush.xpose.msra.mxu0 %v648
        %v650 = vand.u32 %v330, 4294901760
        %v651 = vsub.f32 %v330, %v650
        %v652 = vand.u32 %v651, 4294901760
        %653 = vmatpush.xpose.msra.mxu0 %v652
        %v654 = vand.u32 %v329, 4294901760
        %v655 = vsub.f32 %v329, %v654
        %v656 = vand.u32 %v655, 4294901760
        %657 = vmatpush.xpose.msra.mxu0 %v656
        %v658 = vand.u32 %v328, 4294901760
        %v659 = vsub.f32 %v328, %v658
        %v660 = vand.u32 %v659, 4294901760
        %661 = vmatpush.xpose.msra.mxu0 %v660
        %v662 = vand.u32 %v327, 4294901760
        %v663 = vsub.f32 %v327, %v662
        %v664 = vand.u32 %v663, 4294901760
        %665 = vmatpush.xpose.msra.mxu0 %v664
        %v666 = vand.u32 %v326, 4294901760
        %v667 = vsub.f32 %v326, %v666
        %v668 = vand.u32 %v667, 4294901760
        %669 = vmatpush.xpose.msra.mxu0 %v668
        %v670 = vand.u32 %v325, 4294901760
        %v671 = vsub.f32 %v325, %v670
        %v672 = vand.u32 %v671, 4294901760
        %673 = vmatpush.xpose.msra.mxu0 %v672
        %v674 = vand.u32 %v324, 4294901760
        %v675 = vsub.f32 %v324, %v674
        %v676 = vand.u32 %v675, 4294901760
        %677 = vmatpush.xpose.msra.mxu0 %v676
        %v678 = vand.u32 %v323, 4294901760
        %v679 = vsub.f32 %v323, %v678
        %v680 = vand.u32 %v679, 4294901760
        %681 = vmatpush.xpose.msra.mxu0 %v680
        %v682 = vand.u32 %v322, 4294901760
        %v683 = vsub.f32 %v322, %v682
        %v684 = vand.u32 %v683, 4294901760
        %685 = vmatpush.xpose.msra.mxu0 %v684
        %v686 = vand.u32 %v355, 4294901760
        %687 = vmatmul.f32.gmra.mxu0 %v686
        %v688 = vpop.f32.mrf.mxu0
        %v689 = vadd.f32 %v614, %v688
        %v690 = vand.u32 %v356, 4294901760
        %691 = vmatmul.f32.gmra.mxu0 %v690
        %v692 = vpop.f32.mrf.mxu0
        %v693 = vadd.f32 %v620, %v692
        %694 = vdwg.mxu0
        %v695 = vand.u32 %v337, 4294901760
        %696 = vmatpush.xpose.msra.mxu0 %v695
        %v697 = vand.u32 %v336, 4294901760
        %698 = vmatpush.xpose.msra.mxu0 %v697
        %v699 = vand.u32 %v335, 4294901760
        %700 = vmatpush.xpose.msra.mxu0 %v699
        %v701 = vand.u32 %v334, 4294901760
        %702 = vmatpush.xpose.msra.mxu0 %v701
        %v703 = vand.u32 %v333, 4294901760
        %704 = vmatpush.xpose.msra.mxu0 %v703
        %v705 = vand.u32 %v332, 4294901760
        %706 = vmatpush.xpose.msra.mxu0 %v705
        %v707 = vand.u32 %v331, 4294901760
        %708 = vmatpush.xpose.msra.mxu0 %v707
        %v709 = vand.u32 %v330, 4294901760
        %710 = vmatpush.xpose.msra.mxu0 %v709
        %v711 = vand.u32 %v329, 4294901760
        %712 = vmatpush.xpose.msra.mxu0 %v711
        %v713 = vand.u32 %v328, 4294901760
        %714 = vmatpush.xpose.msra.mxu0 %v713
        %v715 = vand.u32 %v327, 4294901760
        %716 = vmatpush.xpose.msra.mxu0 %v715
        %v717 = vand.u32 %v326, 4294901760
        %718 = vmatpush.xpose.msra.mxu0 %v717
        %v719 = vand.u32 %v325, 4294901760
        %720 = vmatpush.xpose.msra.mxu0 %v719
        %v721 = vand.u32 %v324, 4294901760
        %722 = vmatpush.xpose.msra.mxu0 %v721
        %v723 = vand.u32 %v323, 4294901760
        %724 = vmatpush.xpose.msra.mxu0 %v723
        %v725 = vand.u32 %v322, 4294901760
        %726 = vmatpush.xpose.msra.mxu0 %v725
        %v727 = vand.u32 %v355, 4294901760
        %728 = vmatmul.f32.gmra.mxu0 %v727
        %v729 = vpop.f32.mrf.mxu0
        %v730 = vadd.f32 %v689, %v729
        %v731 = vand.u32 %v356, 4294901760
        %732 = vmatmul.f32.gmra.mxu0 %v731
        %v733 = vpop.f32.mrf.mxu0
        %v734 = vadd.f32 %v693, %v733
        %735 = vdwg.mxu0
        %v737 = vrot.slane %v350, 3
        %s738 = vtos %v737
        %v739 = vstv %s738
        %v741 = vadd.f32 %v730, %v739
        %v742 = vadd.f32 %v734, %v739
        %v743 = vperm.slane %v348, 0
        %vm744 = vcmp.eq.s32.totalorder %v743, 1
        %v745 = vsel %vm744, %v741, -1e+30
        %v746 = vsel %vm744, %v742, -1e+30
        %747 = vmax.xlane.f32.xlu0 %v745
        %v748 = vpop.xlane.xlu0 %747
        %749 = vmax.xlane.f32.xlu0 %v746
        %v750 = vpop.xlane.xlu0 %749
        %v751 = vsub.f32 %v741, %v748
        %v752 = vsub.f32 %v742, %v750
        %v753 = vmin.f32 %v751, 0.0
        %v754 = vmin.f32 %v752, 0.0
        %v755 = vmul.f32 %v753, 1.442695
        %v756 = vpow.pop %v755
        %v757 = vmul.f32 %v754, 1.442695
        %v758 = vpow.pop %v757
        %v760 = vperm.slane %v349, 0
        %v762 = vmul.f32 %v756, %v760
        %v763 = vmul.f32 %v758, %v760
        %764 = vadd.xlane.f32.xlu0 %v762
        %v765 = vpop.xlane.xlu0 %764
        %766 = vadd.xlane.f32.xlu0 %v763
        %v767 = vpop.xlane.xlu0 %766
        %v768 = vrcp.pop %v765
        %v769 = vmul.f32 %v765, %v768
        %v770 = vsub.f32 1.0, %v769
        %v771 = vmul.f32 %v768, %v770
        %v772 = vadd.f32 %v768, %v771
        %vm773 = vweird.f32 %v765
        %vm774 = vweird.f32 %v768
        %vm775 = vmor %vm773, %vm774
        %v776 = vsel %vm775, %v768, %v772
        %v777 = vand.u32 2147483647, %v765
        %vm778 = vcmp.eq.f32.partialorder %v777, 8.507059e+37
        %v779 = vand.u32 %v765, 2147483648
        %v780 = vor.u32 1.1754944e-38, %v779
        %v781 = vsel %vm778, %v780, %v776
        %v782 = vmul.f32 %v762, %v781
        %v783 = vrcp.pop %v767
        %v784 = vmul.f32 %v767, %v783
        %v785 = vsub.f32 1.0, %v784
        %v786 = vmul.f32 %v783, %v785
        %v787 = vadd.f32 %v783, %v786
        %vm788 = vweird.f32 %v767
        %vm789 = vweird.f32 %v783
        %vm790 = vmor %vm788, %vm789
        %v791 = vsel %vm790, %v783, %v787
        %v792 = vand.u32 2147483647, %v767
        %vm793 = vcmp.eq.f32.partialorder %v792, 8.507059e+37
        %v794 = vand.u32 %v767, 2147483648
        %v795 = vor.u32 1.1754944e-38, %v794
        %v796 = vsel %vm793, %v795, %v791
        %v797 = vmul.f32 %v763, %v796
        %798 = vset.pattern.permute.xlu0 0
        %799 = vperm.xlu0 %798, %v344
        %v800 = vpop.permute.xlu0 %799
        %801 = vset.pattern.permute.xlu0 0
        %802 = vperm.xlu0 %801, %v345
        %v803 = vpop.permute.xlu0 %802
        %vm804 = vcmp.eq.s32.totalorder %v800, 1
        %vm805 = vcmp.eq.s32.totalorder %v803, 1
        %v806 = vsel %vm804, %v741, -1e+30
        %v807 = vsel %vm805, %v742, -1e+30
        %v808 = vmax.f32 %v806, %v807
        %v809 = vrot.slane %v808, 4
        %v810 = vmax.f32 %v808, %v809
        %v811 = vrot.slane %v810, 2
        %v812 = vmax.f32 %v810, %v811
        %v813 = vrot.slane %v812, 1
        %v814 = vmax.f32 %v812, %v813
        %v815 = vsub.f32 %v741, %v814
        %v816 = vsub.f32 %v742, %v814
        %v817 = vmin.f32 %v815, 0.0
        %v818 = vmin.f32 %v816, 0.0
        %v819 = vmul.f32 %v817, 1.442695
        %v820 = vpow.pop %v819
        %v821 = vmul.f32 %v818, 1.442695
        %v822 = vpow.pop %v821
        %824 = vset.pattern.permute.xlu0 0
        %825 = vperm.xlu0 %824, %v346
        %v826 = vpop.permute.xlu0 %825
        %829 = vset.pattern.permute.xlu0 0
        %830 = vperm.xlu0 %829, %v347
        %v831 = vpop.permute.xlu0 %830
        %v833 = vmul.f32 %v820, %v826
        %v834 = vmul.f32 %v822, %v831
        %v835 = vadd.f32 %v833, %v834
        %v836 = vrot.slane %v835, 4
        %v837 = vadd.f32 %v835, %v836
        %v838 = vrot.slane %v837, 2
        %v839 = vadd.f32 %v837, %v838
        %v840 = vrot.slane %v839, 1
        %v841 = vadd.f32 %v839, %v840
        %v842 = vrcp.pop %v841
        %v843 = vmul.f32 %v841, %v842
        %v844 = vsub.f32 1.0, %v843
        %v845 = vmul.f32 %v842, %v844
        %v846 = vadd.f32 %v842, %v845
        %vm847 = vweird.f32 %v841
        %vm848 = vweird.f32 %v842
        %vm849 = vmor %vm847, %vm848
        %v850 = vsel %vm849, %v842, %v846
        %v851 = vand.u32 2147483647, %v841
        %vm852 = vcmp.eq.f32.partialorder %v851, 8.507059e+37
        %v853 = vand.u32 %v841, 2147483648
        %v854 = vor.u32 1.1754944e-38, %v853
        %v855 = vsel %vm852, %v854, %v850
        %v856 = vmul.f32 %v833, %v855
        %v857 = vmul.f32 %v834, %v855
        %858 = vxpose.xlu0.b32.start [1/16] %v856, 128
        %859 = vxpose.xlu0.b32.cont [2/16] %v857, 128
        %860 = vxpose.xlu0.b32.cont [3/16] 0.0, 128
        %861 = vxpose.xlu0.b32.cont [4/16] 0.0, 128
        %862 = vxpose.xlu0.b32.cont [5/16] 0.0, 128
        %863 = vxpose.xlu0.b32.cont [6/16] 0.0, 128
        %864 = vxpose.xlu0.b32.cont [7/16] 0.0, 128
        %865 = vxpose.xlu0.b32.cont [8/16] 0.0, 128
        %866 = vxpose.xlu0.b32.cont [9/16] 0.0, 128
        %867 = vxpose.xlu0.b32.cont [10/16] 0.0, 128
        %868 = vxpose.xlu0.b32.cont [11/16] 0.0, 128
        %869 = vxpose.xlu0.b32.cont [12/16] 0.0, 128
        %870 = vxpose.xlu0.b32.cont [13/16] 0.0, 128
        %871 = vxpose.xlu0.b32.cont [14/16] 0.0, 128
        %872 = vxpose.xlu0.b32.cont [15/16] 0.0, 128
        %873 = vxpose.xlu0.b32.end [16/16] 0.0, 128
        %v874 = vpop.trf.xlu0
        %v875 = vpop.trf.xlu0
        %v876 = vpop.trf.xlu0
        %v877 = vpop.trf.xlu0
        %v878 = vpop.trf.xlu0
        %v879 = vpop.trf.xlu0
        %v880 = vpop.trf.xlu0
        %v881 = vpop.trf.xlu0
        %v882 = vpop.trf.xlu0
        %v883 = vpop.trf.xlu0
        %v884 = vpop.trf.xlu0
        %v885 = vpop.trf.xlu0
        %v886 = vpop.trf.xlu0
        %v887 = vpop.trf.xlu0
        %v888 = vpop.trf.xlu0
        %v889 = vpop.trf.xlu0
        %vm890 = vcmask 130048
        %v892 = vsel %vm890, %v874, 0
        %v895 = vsel %vm890, %v875, 0
        %v898 = vsel %vm890, %v876, 0
        %v901 = vsel %vm890, %v877, 0
        %v904 = vsel %vm890, %v878, 0
        %v907 = vsel %vm890, %v879, 0
        %v910 = vsel %vm890, %v880, 0
        %v913 = vsel %vm890, %v881, 0
        %v916 = vsel %vm890, %v882, 0
        %v919 = vsel %vm890, %v883, 0
        %v922 = vsel %vm890, %v884, 0
        %v925 = vsel %vm890, %v885, 0
        %v928 = vsel %vm890, %v886, 0
        %v931 = vsel %vm890, %v887, 0
        %v934 = vsel %vm890, %v888, 0
        %v937 = vsel %vm890, %v889, 0
        %939 = vmatpush.msra.mxu0 0.0
        %940 = vmatpush.msra.mxu0 0.0
        %941 = vmatpush.msra.mxu0 0.0
        %942 = vmatpush.msra.mxu0 0.0
        %943 = vmatpush.msra.mxu0 0.0
        %944 = vmatpush.msra.mxu0 0.0
        %945 = vmatpush.msra.mxu0 0.0
        %946 = vmatpush.msra.mxu0 0.0
        %947 = vmatpush.msra.mxu0 0.0
        %948 = vmatpush.msra.mxu0 0.0
        %949 = vmatpush.msra.mxu0 0.0
        %950 = vmatpush.msra.mxu0 0.0
        %951 = vmatpush.msra.mxu0 0.0
        %952 = vmatpush.msra.mxu0 0.0
        %v953 = vand.u32 %v321, 4294901760
        %954 = vmatpush.msra.mxu0 %v953
        %v955 = vand.u32 %v320, 4294901760
        %956 = vmatpush.msra.mxu0 %v955
        %v957 = vand.u32 %v892, 4294901760
        %v958 = vsub.f32 %v892, %v957
        %v959 = vand.u32 %v958, 4294901760
        %v960 = vsub.f32 %v958, %v959
        %v961 = vand.u32 %v960, 4294901760
        %962 = vmatmul.f32.gmra.mxu0 %v961
        %v963 = vpop.f32.mrf.mxu0
        %v964 = vadd.f32 0.0, %v963
        %v965 = vand.u32 %v895, 4294901760
        %v966 = vsub.f32 %v895, %v965
        %v967 = vand.u32 %v966, 4294901760
        %v968 = vsub.f32 %v966, %v967
        %v969 = vand.u32 %v968, 4294901760
        %970 = vmatmul.f32.gmra.mxu0 %v969
        %v971 = vpop.f32.mrf.mxu0
        %v972 = vadd.f32 0.0, %v971
        %v973 = vand.u32 %v898, 4294901760
        %v974 = vsub.f32 %v898, %v973
        %v975 = vand.u32 %v974, 4294901760
        %v976 = vsub.f32 %v974, %v975
        %v977 = vand.u32 %v976, 4294901760
        %978 = vmatmul.f32.gmra.mxu0 %v977
        %v979 = vpop.f32.mrf.mxu0
        %v980 = vadd.f32 0.0, %v979
        %v981 = vand.u32 %v901, 4294901760
        %v982 = vsub.f32 %v901, %v981
        %v983 = vand.u32 %v982, 4294901760
        %v984 = vsub.f32 %v982, %v983
        %v985 = vand.u32 %v984, 4294901760
        %986 = vmatmul.f32.gmra.mxu0 %v985
        %v987 = vpop.f32.mrf.mxu0
        %v988 = vadd.f32 0.0, %v987
        %v989 = vand.u32 %v904, 4294901760
        %v990 = vsub.f32 %v904, %v989
        %v991 = vand.u32 %v990, 4294901760
        %v992 = vsub.f32 %v990, %v991
        %v993 = vand.u32 %v992, 4294901760
        %994 = vmatmul.f32.gmra.mxu0 %v993
        %v995 = vpop.f32.mrf.mxu0
        %v996 = vadd.f32 0.0, %v995
        %v997 = vand.u32 %v907, 4294901760
        %v998 = vsub.f32 %v907, %v997
        %v999 = vand.u32 %v998, 4294901760
        %v1000 = vsub.f32 %v998, %v999
        %v1001 = vand.u32 %v1000, 4294901760
        %1002 = vmatmul.f32.gmra.mxu0 %v1001
        %v1003 = vpop.f32.mrf.mxu0
        %v1004 = vadd.f32 0.0, %v1003
        %v1005 = vand.u32 %v910, 4294901760
        %v1006 = vsub.f32 %v910, %v1005
        %v1007 = vand.u32 %v1006, 4294901760
        %v1008 = vsub.f32 %v1006, %v1007
        %v1009 = vand.u32 %v1008, 4294901760
        %1010 = vmatmul.f32.gmra.mxu0 %v1009
        %v1011 = vpop.f32.mrf.mxu0
        %v1012 = vadd.f32 0.0, %v1011
        %v1013 = vand.u32 %v913, 4294901760
        %v1014 = vsub.f32 %v913, %v1013
        %v1015 = vand.u32 %v1014, 4294901760
        %v1016 = vsub.f32 %v1014, %v1015
        %v1017 = vand.u32 %v1016, 4294901760
        %1018 = vmatmul.f32.gmra.mxu0 %v1017
        %v1019 = vpop.f32.mrf.mxu0
        %v1020 = vadd.f32 0.0, %v1019
        %v1021 = vand.u32 %v916, 4294901760
        %v1022 = vsub.f32 %v916, %v1021
        %v1023 = vand.u32 %v1022, 4294901760
        %v1024 = vsub.f32 %v1022, %v1023
        %v1025 = vand.u32 %v1024, 4294901760
        %1026 = vmatmul.f32.gmra.mxu0 %v1025
        %v1027 = vpop.f32.mrf.mxu0
        %v1028 = vadd.f32 0.0, %v1027
        %v1029 = vand.u32 %v919, 4294901760
        %v1030 = vsub.f32 %v919, %v1029
        %v1031 = vand.u32 %v1030, 4294901760
        %v1032 = vsub.f32 %v1030, %v1031
        %v1033 = vand.u32 %v1032, 4294901760
        %1034 = vmatmul.f32.gmra.mxu0 %v1033
        %v1035 = vpop.f32.mrf.mxu0
        %v1036 = vadd.f32 0.0, %v1035
        %v1037 = vand.u32 %v922, 4294901760
        %v1038 = vsub.f32 %v922, %v1037
        %v1039 = vand.u32 %v1038, 4294901760
        %v1040 = vsub.f32 %v1038, %v1039
        %v1041 = vand.u32 %v1040, 4294901760
        %1042 = vmatmul.f32.gmra.mxu0 %v1041
        %v1043 = vpop.f32.mrf.mxu0
        %v1044 = vadd.f32 0.0, %v1043
        %v1045 = vand.u32 %v925, 4294901760
        %v1046 = vsub.f32 %v925, %v1045
        %v1047 = vand.u32 %v1046, 4294901760
        %v1048 = vsub.f32 %v1046, %v1047
        %v1049 = vand.u32 %v1048, 4294901760
        %1050 = vmatmul.f32.gmra.mxu0 %v1049
        %v1051 = vpop.f32.mrf.mxu0
        %v1052 = vadd.f32 0.0, %v1051
        %v1053 = vand.u32 %v928, 4294901760
        %v1054 = vsub.f32 %v928, %v1053
        %v1055 = vand.u32 %v1054, 4294901760
        %v1056 = vsub.f32 %v1054, %v1055
        %v1057 = vand.u32 %v1056, 4294901760
        %1058 = vmatmul.f32.gmra.mxu0 %v1057
        %v1059 = vpop.f32.mrf.mxu0
        %v1060 = vadd.f32 0.0, %v1059
        %v1061 = vand.u32 %v931, 4294901760
        %v1062 = vsub.f32 %v931, %v1061
        %v1063 = vand.u32 %v1062, 4294901760
        %v1064 = vsub.f32 %v1062, %v1063
        %v1065 = vand.u32 %v1064, 4294901760
        %1066 = vmatmul.f32.gmra.mxu0 %v1065
        %v1067 = vpop.f32.mrf.mxu0
        %v1068 = vadd.f32 0.0, %v1067
        %v1069 = vand.u32 %v934, 4294901760
        %v1070 = vsub.f32 %v934, %v1069
        %v1071 = vand.u32 %v1070, 4294901760
        %v1072 = vsub.f32 %v1070, %v1071
        %v1073 = vand.u32 %v1072, 4294901760
        %1074 = vmatmul.f32.gmra.mxu0 %v1073
        %v1075 = vpop.f32.mrf.mxu0
        %v1076 = vadd.f32 0.0, %v1075
        %v1077 = vand.u32 %v937, 4294901760
        %v1078 = vsub.f32 %v937, %v1077
        %v1079 = vand.u32 %v1078, 4294901760
        %v1080 = vsub.f32 %v1078, %v1079
        %v1081 = vand.u32 %v1080, 4294901760
        %1082 = vmatmul.f32.gmra.mxu0 %v1081
        %v1083 = vpop.f32.mrf.mxu0
        %v1084 = vadd.f32 0.0, %v1083
        %1085 = vdwg.mxu0
        %1086 = vmatpush.msra.mxu0 0.0
        %1087 = vmatpush.msra.mxu0 0.0
        %1088 = vmatpush.msra.mxu0 0.0
        %1089 = vmatpush.msra.mxu0 0.0
        %1090 = vmatpush.msra.mxu0 0.0
        %1091 = vmatpush.msra.mxu0 0.0
        %1092 = vmatpush.msra.mxu0 0.0
        %1093 = vmatpush.msra.mxu0 0.0
        %1094 = vmatpush.msra.mxu0 0.0
        %1095 = vmatpush.msra.mxu0 0.0
        %1096 = vmatpush.msra.mxu0 0.0
        %1097 = vmatpush.msra.mxu0 0.0
        %1098 = vmatpush.msra.mxu0 0.0
        %1099 = vmatpush.msra.mxu0 0.0
        %v1100 = vand.u32 %v321, 4294901760
        %v1101 = vsub.f32 %v321, %v1100
        %v1102 = vand.u32 %v1101, 4294901760
        %v1103 = vsub.f32 %v1101, %v1102
        %v1104 = vand.u32 %v1103, 4294901760
        %1105 = vmatpush.msra.mxu0 %v1104
        %v1106 = vand.u32 %v320, 4294901760
        %v1107 = vsub.f32 %v320, %v1106
        %v1108 = vand.u32 %v1107, 4294901760
        %v1109 = vsub.f32 %v1107, %v1108
        %v1110 = vand.u32 %v1109, 4294901760
        %1111 = vmatpush.msra.mxu0 %v1110
        %v1112 = vand.u32 %v892, 4294901760
        %1113 = vmatmul.f32.gmra.mxu0 %v1112
        %v1114 = vpop.f32.mrf.mxu0
        %v1115 = vadd.f32 %v964, %v1114
        %v1116 = vand.u32 %v895, 4294901760
        %1117 = vmatmul.f32.gmra.mxu0 %v1116
        %v1118 = vpop.f32.mrf.mxu0
        %v1119 = vadd.f32 %v972, %v1118
        %v1120 = vand.u32 %v898, 4294901760
        %1121 = vmatmul.f32.gmra.mxu0 %v1120
        %v1122 = vpop.f32.mrf.mxu0
        %v1123 = vadd.f32 %v980, %v1122
        %v1124 = vand.u32 %v901, 4294901760
        %1125 = vmatmul.f32.gmra.mxu0 %v1124
        %v1126 = vpop.f32.mrf.mxu0
        %v1127 = vadd.f32 %v988, %v1126
        %v1128 = vand.u32 %v904, 4294901760
        %1129 = vmatmul.f32.gmra.mxu0 %v1128
        %v1130 = vpop.f32.mrf.mxu0
        %v1131 = vadd.f32 %v996, %v1130
        %v1132 = vand.u32 %v907, 4294901760
        %1133 = vmatmul.f32.gmra.mxu0 %v1132
        %v1134 = vpop.f32.mrf.mxu0
        %v1135 = vadd.f32 %v1004, %v1134
        %v1136 = vand.u32 %v910, 4294901760
        %1137 = vmatmul.f32.gmra.mxu0 %v1136
        %v1138 = vpop.f32.mrf.mxu0
        %v1139 = vadd.f32 %v1012, %v1138
        %v1140 = vand.u32 %v913, 4294901760
        %1141 = vmatmul.f32.gmra.mxu0 %v1140
        %v1142 = vpop.f32.mrf.mxu0
        %v1143 = vadd.f32 %v1020, %v1142
        %v1144 = vand.u32 %v916, 4294901760
        %1145 = vmatmul.f32.gmra.mxu0 %v1144
        %v1146 = vpop.f32.mrf.mxu0
        %v1147 = vadd.f32 %v1028, %v1146
        %v1148 = vand.u32 %v919, 4294901760
        %1149 = vmatmul.f32.gmra.mxu0 %v1148
        %v1150 = vpop.f32.mrf.mxu0
        %v1151 = vadd.f32 %v1036, %v1150
        %v1152 = vand.u32 %v922, 4294901760
        %1153 = vmatmul.f32.gmra.mxu0 %v1152
        %v1154 = vpop.f32.mrf.mxu0
        %v1155 = vadd.f32 %v1044, %v1154
        %v1156 = vand.u32 %v925, 4294901760
        %1157 = vmatmul.f32.gmra.mxu0 %v1156
        %v1158 = vpop.f32.mrf.mxu0
        %v1159 = vadd.f32 %v1052, %v1158
        %v1160 = vand.u32 %v928, 4294901760
        %1161 = vmatmul.f32.gmra.mxu0 %v1160
        %v1162 = vpop.f32.mrf.mxu0
        %v1163 = vadd.f32 %v1060, %v1162
        %v1164 = vand.u32 %v931, 4294901760
        %1165 = vmatmul.f32.gmra.mxu0 %v1164
        %v1166 = vpop.f32.mrf.mxu0
        %v1167 = vadd.f32 %v1068, %v1166
        %v1168 = vand.u32 %v934, 4294901760
        %1169 = vmatmul.f32.gmra.mxu0 %v1168
        %v1170 = vpop.f32.mrf.mxu0
        %v1171 = vadd.f32 %v1076, %v1170
        %v1172 = vand.u32 %v937, 4294901760
        %1173 = vmatmul.f32.gmra.mxu0 %v1172
        %v1174 = vpop.f32.mrf.mxu0
        %v1175 = vadd.f32 %v1084, %v1174
        %1176 = vdwg.mxu0
        %1177 = vmatpush.msra.mxu0 0.0
        %1178 = vmatpush.msra.mxu0 0.0
        %1179 = vmatpush.msra.mxu0 0.0
        %1180 = vmatpush.msra.mxu0 0.0
        %1181 = vmatpush.msra.mxu0 0.0
        %1182 = vmatpush.msra.mxu0 0.0
        %1183 = vmatpush.msra.mxu0 0.0
        %1184 = vmatpush.msra.mxu0 0.0
        %1185 = vmatpush.msra.mxu0 0.0
        %1186 = vmatpush.msra.mxu0 0.0
        %1187 = vmatpush.msra.mxu0 0.0
        %1188 = vmatpush.msra.mxu0 0.0
        %1189 = vmatpush.msra.mxu0 0.0
        %1190 = vmatpush.msra.mxu0 0.0
        %v1191 = vand.u32 %v321, 4294901760
        %v1192 = vsub.f32 %v321, %v1191
        %1193 = vmatpush.msra.mxu0 %v1192
        %v1194 = vand.u32 %v320, 4294901760
        %v1195 = vsub.f32 %v320, %v1194
        %1196 = vmatpush.msra.mxu0 %v1195
        %v1197 = vand.u32 %v892, 4294901760
        %v1198 = vsub.f32 %v892, %v1197
        %1199 = vmatmul.f32.gmra.mxu0 %v1198
        %v1200 = vpop.f32.mrf.mxu0
        %v1201 = vadd.f32 %v1115, %v1200
        %v1202 = vand.u32 %v895, 4294901760
        %v1203 = vsub.f32 %v895, %v1202
        %1204 = vmatmul.f32.gmra.mxu0 %v1203
        %v1205 = vpop.f32.mrf.mxu0
        %v1206 = vadd.f32 %v1119, %v1205
        %v1207 = vand.u32 %v898, 4294901760
        %v1208 = vsub.f32 %v898, %v1207
        %1209 = vmatmul.f32.gmra.mxu0 %v1208
        %v1210 = vpop.f32.mrf.mxu0
        %v1211 = vadd.f32 %v1123, %v1210
        %v1212 = vand.u32 %v901, 4294901760
        %v1213 = vsub.f32 %v901, %v1212
        %1214 = vmatmul.f32.gmra.mxu0 %v1213
        %v1215 = vpop.f32.mrf.mxu0
        %v1216 = vadd.f32 %v1127, %v1215
        %v1217 = vand.u32 %v904, 4294901760
        %v1218 = vsub.f32 %v904, %v1217
        %1219 = vmatmul.f32.gmra.mxu0 %v1218
        %v1220 = vpop.f32.mrf.mxu0
        %v1221 = vadd.f32 %v1131, %v1220
        %v1222 = vand.u32 %v907, 4294901760
        %v1223 = vsub.f32 %v907, %v1222
        %1224 = vmatmul.f32.gmra.mxu0 %v1223
        %v1225 = vpop.f32.mrf.mxu0
        %v1226 = vadd.f32 %v1135, %v1225
        %v1227 = vand.u32 %v910, 4294901760
        %v1228 = vsub.f32 %v910, %v1227
        %1229 = vmatmul.f32.gmra.mxu0 %v1228
        %v1230 = vpop.f32.mrf.mxu0
        %v1231 = vadd.f32 %v1139, %v1230
        %v1232 = vand.u32 %v913, 4294901760
        %v1233 = vsub.f32 %v913, %v1232
        %1234 = vmatmul.f32.gmra.mxu0 %v1233
        %v1235 = vpop.f32.mrf.mxu0
        %v1236 = vadd.f32 %v1143, %v1235
        %v1237 = vand.u32 %v916, 4294901760
        %v1238 = vsub.f32 %v916, %v1237
        %1239 = vmatmul.f32.gmra.mxu0 %v1238
        %v1240 = vpop.f32.mrf.mxu0
        %v1241 = vadd.f32 %v1147, %v1240
        %v1242 = vand.u32 %v919, 4294901760
        %v1243 = vsub.f32 %v919, %v1242
        %1244 = vmatmul.f32.gmra.mxu0 %v1243
        %v1245 = vpop.f32.mrf.mxu0
        %v1246 = vadd.f32 %v1151, %v1245
        %v1247 = vand.u32 %v922, 4294901760
        %v1248 = vsub.f32 %v922, %v1247
        %1249 = vmatmul.f32.gmra.mxu0 %v1248
        %v1250 = vpop.f32.mrf.mxu0
        %v1251 = vadd.f32 %v1155, %v1250
        %v1252 = vand.u32 %v925, 4294901760
        %v1253 = vsub.f32 %v925, %v1252
        %1254 = vmatmul.f32.gmra.mxu0 %v1253
        %v1255 = vpop.f32.mrf.mxu0
        %v1256 = vadd.f32 %v1159, %v1255
        %v1257 = vand.u32 %v928, 4294901760
        %v1258 = vsub.f32 %v928, %v1257
        %1259 = vmatmul.f32.gmra.mxu0 %v1258
        %v1260 = vpop.f32.mrf.mxu0
        %v1261 = vadd.f32 %v1163, %v1260
        %v1262 = vand.u32 %v931, 4294901760
        %v1263 = vsub.f32 %v931, %v1262
        %1264 = vmatmul.f32.gmra.mxu0 %v1263
        %v1265 = vpop.f32.mrf.mxu0
        %v1266 = vadd.f32 %v1167, %v1265
        %v1267 = vand.u32 %v934, 4294901760
        %v1268 = vsub.f32 %v934, %v1267
        %1269 = vmatmul.f32.gmra.mxu0 %v1268
        %v1270 = vpop.f32.mrf.mxu0
        %v1271 = vadd.f32 %v1171, %v1270
        %v1272 = vand.u32 %v937, 4294901760
        %v1273 = vsub.f32 %v937, %v1272
        %1274 = vmatmul.f32.gmra.mxu0 %v1273
        %v1275 = vpop.f32.mrf.mxu0
        %v1276 = vadd.f32 %v1175, %v1275
        %1277 = vdwg.mxu0
        %1278 = vmatpush.msra.mxu0 0.0
        %1279 = vmatpush.msra.mxu0 0.0
        %1280 = vmatpush.msra.mxu0 0.0
        %1281 = vmatpush.msra.mxu0 0.0
        %1282 = vmatpush.msra.mxu0 0.0
        %1283 = vmatpush.msra.mxu0 0.0
        %1284 = vmatpush.msra.mxu0 0.0
        %1285 = vmatpush.msra.mxu0 0.0
        %1286 = vmatpush.msra.mxu0 0.0
        %1287 = vmatpush.msra.mxu0 0.0
        %1288 = vmatpush.msra.mxu0 0.0
        %1289 = vmatpush.msra.mxu0 0.0
        %1290 = vmatpush.msra.mxu0 0.0
        %1291 = vmatpush.msra.mxu0 0.0
        %v1292 = vand.u32 %v321, 4294901760
        %1293 = vmatpush.msra.mxu0 %v1292
        %v1294 = vand.u32 %v320, 4294901760
        %1295 = vmatpush.msra.mxu0 %v1294
        %v1296 = vand.u32 %v892, 4294901760
        %v1297 = vsub.f32 %v892, %v1296
        %v1298 = vand.u32 %v1297, 4294901760
        %1299 = vmatmul.f32.gmra.mxu0 %v1298
        %v1300 = vpop.f32.mrf.mxu0
        %v1301 = vadd.f32 %v1201, %v1300
        %v1302 = vand.u32 %v895, 4294901760
        %v1303 = vsub.f32 %v895, %v1302
        %v1304 = vand.u32 %v1303, 4294901760
        %1305 = vmatmul.f32.gmra.mxu0 %v1304
        %v1306 = vpop.f32.mrf.mxu0
        %v1307 = vadd.f32 %v1206, %v1306
        %v1308 = vand.u32 %v898, 4294901760
        %v1309 = vsub.f32 %v898, %v1308
        %v1310 = vand.u32 %v1309, 4294901760
        %1311 = vmatmul.f32.gmra.mxu0 %v1310
        %v1312 = vpop.f32.mrf.mxu0
        %v1313 = vadd.f32 %v1211, %v1312
        %v1314 = vand.u32 %v901, 4294901760
        %v1315 = vsub.f32 %v901, %v1314
        %v1316 = vand.u32 %v1315, 4294901760
        %1317 = vmatmul.f32.gmra.mxu0 %v1316
        %v1318 = vpop.f32.mrf.mxu0
        %v1319 = vadd.f32 %v1216, %v1318
        %v1320 = vand.u32 %v904, 4294901760
        %v1321 = vsub.f32 %v904, %v1320
        %v1322 = vand.u32 %v1321, 4294901760
        %1323 = vmatmul.f32.gmra.mxu0 %v1322
        %v1324 = vpop.f32.mrf.mxu0
        %v1325 = vadd.f32 %v1221, %v1324
        %v1326 = vand.u32 %v907, 4294901760
        %v1327 = vsub.f32 %v907, %v1326
        %v1328 = vand.u32 %v1327, 4294901760
        %1329 = vmatmul.f32.gmra.mxu0 %v1328
        %v1330 = vpop.f32.mrf.mxu0
        %v1331 = vadd.f32 %v1226, %v1330
        %v1332 = vand.u32 %v910, 4294901760
        %v1333 = vsub.f32 %v910, %v1332
        %v1334 = vand.u32 %v1333, 4294901760
        %1335 = vmatmul.f32.gmra.mxu0 %v1334
        %v1336 = vpop.f32.mrf.mxu0
        %v1337 = vadd.f32 %v1231, %v1336
        %v1338 = vand.u32 %v913, 4294901760
        %v1339 = vsub.f32 %v913, %v1338
        %v1340 = vand.u32 %v1339, 4294901760
        %1341 = vmatmul.f32.gmra.mxu0 %v1340
        %v1342 = vpop.f32.mrf.mxu0
        %v1343 = vadd.f32 %v1236, %v1342
        %v1344 = vand.u32 %v916, 4294901760
        %v1345 = vsub.f32 %v916, %v1344
        %v1346 = vand.u32 %v1345, 4294901760
        %1347 = vmatmul.f32.gmra.mxu0 %v1346
        %v1348 = vpop.f32.mrf.mxu0
        %v1349 = vadd.f32 %v1241, %v1348
        %v1350 = vand.u32 %v919, 4294901760
        %v1351 = vsub.f32 %v919, %v1350
        %v1352 = vand.u32 %v1351, 4294901760
        %1353 = vmatmul.f32.gmra.mxu0 %v1352
        %v1354 = vpop.f32.mrf.mxu0
        %v1355 = vadd.f32 %v1246, %v1354
        %v1356 = vand.u32 %v922, 4294901760
        %v1357 = vsub.f32 %v922, %v1356
        %v1358 = vand.u32 %v1357, 4294901760
        %1359 = vmatmul.f32.gmra.mxu0 %v1358
        %v1360 = vpop.f32.mrf.mxu0
        %v1361 = vadd.f32 %v1251, %v1360
        %v1362 = vand.u32 %v925, 4294901760
        %v1363 = vsub.f32 %v925, %v1362
        %v1364 = vand.u32 %v1363, 4294901760
        %1365 = vmatmul.f32.gmra.mxu0 %v1364
        %v1366 = vpop.f32.mrf.mxu0
        %v1367 = vadd.f32 %v1256, %v1366
        %v1368 = vand.u32 %v928, 4294901760
        %v1369 = vsub.f32 %v928, %v1368
        %v1370 = vand.u32 %v1369, 4294901760
        %1371 = vmatmul.f32.gmra.mxu0 %v1370
        %v1372 = vpop.f32.mrf.mxu0
        %v1373 = vadd.f32 %v1261, %v1372
        %v1374 = vand.u32 %v931, 4294901760
        %v1375 = vsub.f32 %v931, %v1374
        %v1376 = vand.u32 %v1375, 4294901760
        %1377 = vmatmul.f32.gmra.mxu0 %v1376
        %v1378 = vpop.f32.mrf.mxu0
        %v1379 = vadd.f32 %v1266, %v1378
        %v1380 = vand.u32 %v934, 4294901760
        %v1381 = vsub.f32 %v934, %v1380
        %v1382 = vand.u32 %v1381, 4294901760
        %1383 = vmatmul.f32.gmra.mxu0 %v1382
        %v1384 = vpop.f32.mrf.mxu0
        %v1385 = vadd.f32 %v1271, %v1384
        %v1386 = vand.u32 %v937, 4294901760
        %v1387 = vsub.f32 %v937, %v1386
        %v1388 = vand.u32 %v1387, 4294901760
        %1389 = vmatmul.f32.gmra.mxu0 %v1388
        %v1390 = vpop.f32.mrf.mxu0
        %v1391 = vadd.f32 %v1276, %v1390
        %1392 = vdwg.mxu0
        %1393 = vmatpush.msra.mxu0 0.0
        %1394 = vmatpush.msra.mxu0 0.0
        %1395 = vmatpush.msra.mxu0 0.0
        %1396 = vmatpush.msra.mxu0 0.0
        %1397 = vmatpush.msra.mxu0 0.0
        %1398 = vmatpush.msra.mxu0 0.0
        %1399 = vmatpush.msra.mxu0 0.0
        %1400 = vmatpush.msra.mxu0 0.0
        %1401 = vmatpush.msra.mxu0 0.0
        %1402 = vmatpush.msra.mxu0 0.0
        %1403 = vmatpush.msra.mxu0 0.0
        %1404 = vmatpush.msra.mxu0 0.0
        %1405 = vmatpush.msra.mxu0 0.0
        %1406 = vmatpush.msra.mxu0 0.0
        %v1407 = vand.u32 %v321, 4294901760
        %v1408 = vsub.f32 %v321, %v1407
        %v1409 = vand.u32 %v1408, 4294901760
        %1410 = vmatpush.msra.mxu0 %v1409
        %v1411 = vand.u32 %v320, 4294901760
        %v1412 = vsub.f32 %v320, %v1411
        %v1413 = vand.u32 %v1412, 4294901760
        %1414 = vmatpush.msra.mxu0 %v1413
        %v1415 = vand.u32 %v892, 4294901760
        %1416 = vmatmul.f32.gmra.mxu0 %v1415
        %v1417 = vpop.f32.mrf.mxu0
        %v1418 = vadd.f32 %v1301, %v1417
        %v1419 = vand.u32 %v895, 4294901760
        %1420 = vmatmul.f32.gmra.mxu0 %v1419
        %v1421 = vpop.f32.mrf.mxu0
        %v1422 = vadd.f32 %v1307, %v1421
        %v1423 = vand.u32 %v898, 4294901760
        %1424 = vmatmul.f32.gmra.mxu0 %v1423
        %v1425 = vpop.f32.mrf.mxu0
        %v1426 = vadd.f32 %v1313, %v1425
        %v1427 = vand.u32 %v901, 4294901760
        %1428 = vmatmul.f32.gmra.mxu0 %v1427
        %v1429 = vpop.f32.mrf.mxu0
        %v1430 = vadd.f32 %v1319, %v1429
        %v1431 = vand.u32 %v904, 4294901760
        %1432 = vmatmul.f32.gmra.mxu0 %v1431
        %v1433 = vpop.f32.mrf.mxu0
        %v1434 = vadd.f32 %v1325, %v1433
        %v1435 = vand.u32 %v907, 4294901760
        %1436 = vmatmul.f32.gmra.mxu0 %v1435
        %v1437 = vpop.f32.mrf.mxu0
        %v1438 = vadd.f32 %v1331, %v1437
        %v1439 = vand.u32 %v910, 4294901760
        %1440 = vmatmul.f32.gmra.mxu0 %v1439
        %v1441 = vpop.f32.mrf.mxu0
        %v1442 = vadd.f32 %v1337, %v1441
        %v1443 = vand.u32 %v913, 4294901760
        %1444 = vmatmul.f32.gmra.mxu0 %v1443
        %v1445 = vpop.f32.mrf.mxu0
        %v1446 = vadd.f32 %v1343, %v1445
        %v1447 = vand.u32 %v916, 4294901760
        %1448 = vmatmul.f32.gmra.mxu0 %v1447
        %v1449 = vpop.f32.mrf.mxu0
        %v1450 = vadd.f32 %v1349, %v1449
        %v1451 = vand.u32 %v919, 4294901760
        %1452 = vmatmul.f32.gmra.mxu0 %v1451
        %v1453 = vpop.f32.mrf.mxu0
        %v1454 = vadd.f32 %v1355, %v1453
        %v1455 = vand.u32 %v922, 4294901760
        %1456 = vmatmul.f32.gmra.mxu0 %v1455
        %v1457 = vpop.f32.mrf.mxu0
        %v1458 = vadd.f32 %v1361, %v1457
        %v1459 = vand.u32 %v925, 4294901760
        %1460 = vmatmul.f32.gmra.mxu0 %v1459
        %v1461 = vpop.f32.mrf.mxu0
        %v1462 = vadd.f32 %v1367, %v1461
        %v1463 = vand.u32 %v928, 4294901760
        %1464 = vmatmul.f32.gmra.mxu0 %v1463
        %v1465 = vpop.f32.mrf.mxu0
        %v1466 = vadd.f32 %v1373, %v1465
        %v1467 = vand.u32 %v931, 4294901760
        %1468 = vmatmul.f32.gmra.mxu0 %v1467
        %v1469 = vpop.f32.mrf.mxu0
        %v1470 = vadd.f32 %v1379, %v1469
        %v1471 = vand.u32 %v934, 4294901760
        %1472 = vmatmul.f32.gmra.mxu0 %v1471
        %v1473 = vpop.f32.mrf.mxu0
        %v1474 = vadd.f32 %v1385, %v1473
        %v1475 = vand.u32 %v937, 4294901760
        %1476 = vmatmul.f32.gmra.mxu0 %v1475
        %v1477 = vpop.f32.mrf.mxu0
        %v1478 = vadd.f32 %v1391, %v1477
        %1479 = vdwg.mxu0
        %1480 = vmatpush.msra.mxu0 0.0
        %1481 = vmatpush.msra.mxu0 0.0
        %1482 = vmatpush.msra.mxu0 0.0
        %1483 = vmatpush.msra.mxu0 0.0
        %1484 = vmatpush.msra.mxu0 0.0
        %1485 = vmatpush.msra.mxu0 0.0
        %1486 = vmatpush.msra.mxu0 0.0
        %1487 = vmatpush.msra.mxu0 0.0
        %1488 = vmatpush.msra.mxu0 0.0
        %1489 = vmatpush.msra.mxu0 0.0
        %1490 = vmatpush.msra.mxu0 0.0
        %1491 = vmatpush.msra.mxu0 0.0
        %1492 = vmatpush.msra.mxu0 0.0
        %1493 = vmatpush.msra.mxu0 0.0
        %v1494 = vand.u32 %v321, 4294901760
        %1495 = vmatpush.msra.mxu0 %v1494
        %v1496 = vand.u32 %v320, 4294901760
        %1497 = vmatpush.msra.mxu0 %v1496
        %v1498 = vand.u32 %v892, 4294901760
        %1499 = vmatmul.f32.gmra.mxu0 %v1498
        %v1500 = vpop.f32.mrf.mxu0
        %v1501 = vadd.f32 %v1418, %v1500
        %v1502 = vand.u32 %v895, 4294901760
        %1503 = vmatmul.f32.gmra.mxu0 %v1502
        %v1504 = vpop.f32.mrf.mxu0
        %v1505 = vadd.f32 %v1422, %v1504
        %v1506 = vand.u32 %v898, 4294901760
        %1507 = vmatmul.f32.gmra.mxu0 %v1506
        %v1508 = vpop.f32.mrf.mxu0
        %v1509 = vadd.f32 %v1426, %v1508
        %v1510 = vand.u32 %v901, 4294901760
        %1511 = vmatmul.f32.gmra.mxu0 %v1510
        %v1512 = vpop.f32.mrf.mxu0
        %v1513 = vadd.f32 %v1430, %v1512
        %v1514 = vand.u32 %v904, 4294901760
        %1515 = vmatmul.f32.gmra.mxu0 %v1514
        %v1516 = vpop.f32.mrf.mxu0
        %v1517 = vadd.f32 %v1434, %v1516
        %v1518 = vand.u32 %v907, 4294901760
        %1519 = vmatmul.f32.gmra.mxu0 %v1518
        %v1520 = vpop.f32.mrf.mxu0
        %v1521 = vadd.f32 %v1438, %v1520
        %v1522 = vand.u32 %v910, 4294901760
        %1523 = vmatmul.f32.gmra.mxu0 %v1522
        %v1524 = vpop.f32.mrf.mxu0
        %v1525 = vadd.f32 %v1442, %v1524
        %v1526 = vand.u32 %v913, 4294901760
        %1527 = vmatmul.f32.gmra.mxu0 %v1526
        %v1528 = vpop.f32.mrf.mxu0
        %v1529 = vadd.f32 %v1446, %v1528
        %v1530 = vand.u32 %v916, 4294901760
        %1531 = vmatmul.f32.gmra.mxu0 %v1530
        %v1532 = vpop.f32.mrf.mxu0
        %v1533 = vadd.f32 %v1450, %v1532
        %v1534 = vand.u32 %v919, 4294901760
        %1535 = vmatmul.f32.gmra.mxu0 %v1534
        %v1536 = vpop.f32.mrf.mxu0
        %v1537 = vadd.f32 %v1454, %v1536
        %v1538 = vand.u32 %v922, 4294901760
        %1539 = vmatmul.f32.gmra.mxu0 %v1538
        %v1540 = vpop.f32.mrf.mxu0
        %v1541 = vadd.f32 %v1458, %v1540
        %v1542 = vand.u32 %v925, 4294901760
        %1543 = vmatmul.f32.gmra.mxu0 %v1542
        %v1544 = vpop.f32.mrf.mxu0
        %v1545 = vadd.f32 %v1462, %v1544
        %v1546 = vand.u32 %v928, 4294901760
        %1547 = vmatmul.f32.gmra.mxu0 %v1546
        %v1548 = vpop.f32.mrf.mxu0
        %v1549 = vadd.f32 %v1466, %v1548
        %v1550 = vand.u32 %v931, 4294901760
        %1551 = vmatmul.f32.gmra.mxu0 %v1550
        %v1552 = vpop.f32.mrf.mxu0
        %v1553 = vadd.f32 %v1470, %v1552
        %v1554 = vand.u32 %v934, 4294901760
        %1555 = vmatmul.f32.gmra.mxu0 %v1554
        %v1556 = vpop.f32.mrf.mxu0
        %v1557 = vadd.f32 %v1474, %v1556
        %v1558 = vand.u32 %v937, 4294901760
        %1559 = vmatmul.f32.gmra.mxu0 %v1558
        %v1560 = vpop.f32.mrf.mxu0
        %v1561 = vadd.f32 %v1478, %v1560
        %1562 = vdwg.mxu0
        %v1563 = vand.u32 %v337, 4294901760
        %1564 = vmatpush.msra.mxu0 %v1563
        %v1565 = vand.u32 %v336, 4294901760
        %1566 = vmatpush.msra.mxu0 %v1565
        %v1567 = vand.u32 %v335, 4294901760
        %1568 = vmatpush.msra.mxu0 %v1567
        %v1569 = vand.u32 %v334, 4294901760
        %1570 = vmatpush.msra.mxu0 %v1569
        %v1571 = vand.u32 %v333, 4294901760
        %1572 = vmatpush.msra.mxu0 %v1571
        %v1573 = vand.u32 %v332, 4294901760
        %1574 = vmatpush.msra.mxu0 %v1573
        %v1575 = vand.u32 %v331, 4294901760
        %1576 = vmatpush.msra.mxu0 %v1575
        %v1577 = vand.u32 %v330, 4294901760
        %1578 = vmatpush.msra.mxu0 %v1577
        %v1579 = vand.u32 %v329, 4294901760
        %1580 = vmatpush.msra.mxu0 %v1579
        %v1581 = vand.u32 %v328, 4294901760
        %1582 = vmatpush.msra.mxu0 %v1581
        %v1583 = vand.u32 %v327, 4294901760
        %1584 = vmatpush.msra.mxu0 %v1583
        %v1585 = vand.u32 %v326, 4294901760
        %1586 = vmatpush.msra.mxu0 %v1585
        %v1587 = vand.u32 %v325, 4294901760
        %1588 = vmatpush.msra.mxu0 %v1587
        %v1589 = vand.u32 %v324, 4294901760
        %1590 = vmatpush.msra.mxu0 %v1589
        %v1591 = vand.u32 %v323, 4294901760
        %1592 = vmatpush.msra.mxu0 %v1591
        %v1593 = vand.u32 %v322, 4294901760
        %1594 = vmatpush.msra.mxu0 %v1593
        %v1595 = vand.u32 %v782, 4294901760
        %v1596 = vsub.f32 %v782, %v1595
        %v1597 = vand.u32 %v1596, 4294901760
        %v1598 = vsub.f32 %v1596, %v1597
        %v1599 = vand.u32 %v1598, 4294901760
        %1600 = vmatmul.f32.gmra.mxu0 %v1599
        %v1601 = vpop.f32.mrf.mxu0
        %v1602 = vadd.f32 0.0, %v1601
        %v1603 = vand.u32 %v797, 4294901760
        %v1604 = vsub.f32 %v797, %v1603
        %v1605 = vand.u32 %v1604, 4294901760
        %v1606 = vsub.f32 %v1604, %v1605
        %v1607 = vand.u32 %v1606, 4294901760
        %1608 = vmatmul.f32.gmra.mxu0 %v1607
        %v1609 = vpop.f32.mrf.mxu0
        %v1610 = vadd.f32 0.0, %v1609
        %1611 = vdwg.mxu0
        %v1612 = vand.u32 %v337, 4294901760
        %v1613 = vsub.f32 %v337, %v1612
        %v1614 = vand.u32 %v1613, 4294901760
        %v1615 = vsub.f32 %v1613, %v1614
        %v1616 = vand.u32 %v1615, 4294901760
        %1617 = vmatpush.msra.mxu0 %v1616
        %v1618 = vand.u32 %v336, 4294901760
        %v1619 = vsub.f32 %v336, %v1618
        %v1620 = vand.u32 %v1619, 4294901760
        %v1621 = vsub.f32 %v1619, %v1620
        %v1622 = vand.u32 %v1621, 4294901760
        %1623 = vmatpush.msra.mxu0 %v1622
        %v1624 = vand.u32 %v335, 4294901760
        %v1625 = vsub.f32 %v335, %v1624
        %v1626 = vand.u32 %v1625, 4294901760
        %v1627 = vsub.f32 %v1625, %v1626
        %v1628 = vand.u32 %v1627, 4294901760
        %1629 = vmatpush.msra.mxu0 %v1628
        %v1630 = vand.u32 %v334, 4294901760
        %v1631 = vsub.f32 %v334, %v1630
        %v1632 = vand.u32 %v1631, 4294901760
        %v1633 = vsub.f32 %v1631, %v1632
        %v1634 = vand.u32 %v1633, 4294901760
        %1635 = vmatpush.msra.mxu0 %v1634
        %v1636 = vand.u32 %v333, 4294901760
        %v1637 = vsub.f32 %v333, %v1636
        %v1638 = vand.u32 %v1637, 4294901760
        %v1639 = vsub.f32 %v1637, %v1638
        %v1640 = vand.u32 %v1639, 4294901760
        %1641 = vmatpush.msra.mxu0 %v1640
        %v1642 = vand.u32 %v332, 4294901760
        %v1643 = vsub.f32 %v332, %v1642
        %v1644 = vand.u32 %v1643, 4294901760
        %v1645 = vsub.f32 %v1643, %v1644
        %v1646 = vand.u32 %v1645, 4294901760
        %1647 = vmatpush.msra.mxu0 %v1646
        %v1648 = vand.u32 %v331, 4294901760
        %v1649 = vsub.f32 %v331, %v1648
        %v1650 = vand.u32 %v1649, 4294901760
        %v1651 = vsub.f32 %v1649, %v1650
        %v1652 = vand.u32 %v1651, 4294901760
        %1653 = vmatpush.msra.mxu0 %v1652
        %v1654 = vand.u32 %v330, 4294901760
        %v1655 = vsub.f32 %v330, %v1654
        %v1656 = vand.u32 %v1655, 4294901760
        %v1657 = vsub.f32 %v1655, %v1656
        %v1658 = vand.u32 %v1657, 4294901760
        %1659 = vmatpush.msra.mxu0 %v1658
        %v1660 = vand.u32 %v329, 4294901760
        %v1661 = vsub.f32 %v329, %v1660
        %v1662 = vand.u32 %v1661, 4294901760
        %v1663 = vsub.f32 %v1661, %v1662
        %v1664 = vand.u32 %v1663, 4294901760
        %1665 = vmatpush.msra.mxu0 %v1664
        %v1666 = vand.u32 %v328, 4294901760
        %v1667 = vsub.f32 %v328, %v1666
        %v1668 = vand.u32 %v1667, 4294901760
        %v1669 = vsub.f32 %v1667, %v1668
        %v1670 = vand.u32 %v1669, 4294901760
        %1671 = vmatpush.msra.mxu0 %v1670
        %v1672 = vand.u32 %v327, 4294901760
        %v1673 = vsub.f32 %v327, %v1672
        %v1674 = vand.u32 %v1673, 4294901760
        %v1675 = vsub.f32 %v1673, %v1674
        %v1676 = vand.u32 %v1675, 4294901760
        %1677 = vmatpush.msra.mxu0 %v1676
        %v1678 = vand.u32 %v326, 4294901760
        %v1679 = vsub.f32 %v326, %v1678
        %v1680 = vand.u32 %v1679, 4294901760
        %v1681 = vsub.f32 %v1679, %v1680
        %v1682 = vand.u32 %v1681, 4294901760
        %1683 = vmatpush.msra.mxu0 %v1682
        %v1684 = vand.u32 %v325, 4294901760
        %v1685 = vsub.f32 %v325, %v1684
        %v1686 = vand.u32 %v1685, 4294901760
        %v1687 = vsub.f32 %v1685, %v1686
        %v1688 = vand.u32 %v1687, 4294901760
        %1689 = vmatpush.msra.mxu0 %v1688
        %v1690 = vand.u32 %v324, 4294901760
        %v1691 = vsub.f32 %v324, %v1690
        %v1692 = vand.u32 %v1691, 4294901760
        %v1693 = vsub.f32 %v1691, %v1692
        %v1694 = vand.u32 %v1693, 4294901760
        %1695 = vmatpush.msra.mxu0 %v1694
        %v1696 = vand.u32 %v323, 4294901760
        %v1697 = vsub.f32 %v323, %v1696
        %v1698 = vand.u32 %v1697, 4294901760
        %v1699 = vsub.f32 %v1697, %v1698
        %v1700 = vand.u32 %v1699, 4294901760
        %1701 = vmatpush.msra.mxu0 %v1700
        %v1702 = vand.u32 %v322, 4294901760
        %v1703 = vsub.f32 %v322, %v1702
        %v1704 = vand.u32 %v1703, 4294901760
        %v1705 = vsub.f32 %v1703, %v1704
        %v1706 = vand.u32 %v1705, 4294901760
        %1707 = vmatpush.msra.mxu0 %v1706
        %v1708 = vand.u32 %v782, 4294901760
        %1709 = vmatmul.f32.gmra.mxu0 %v1708
        %v1710 = vpop.f32.mrf.mxu0
        %v1711 = vadd.f32 %v1602, %v1710
        %v1712 = vand.u32 %v797, 4294901760
        %1713 = vmatmul.f32.gmra.mxu0 %v1712
        %v1714 = vpop.f32.mrf.mxu0
        %v1715 = vadd.f32 %v1610, %v1714
        %1716 = vdwg.mxu0
        %v1717 = vand.u32 %v337, 4294901760
        %v1718 = vsub.f32 %v337, %v1717
        %1719 = vmatpush.msra.mxu0 %v1718
        %v1720 = vand.u32 %v336, 4294901760
        %v1721 = vsub.f32 %v336, %v1720
        %1722 = vmatpush.msra.mxu0 %v1721
        %v1723 = vand.u32 %v335, 4294901760
        %v1724 = vsub.f32 %v335, %v1723
        %1725 = vmatpush.msra.mxu0 %v1724
        %v1726 = vand.u32 %v334, 4294901760
        %v1727 = vsub.f32 %v334, %v1726
        %1728 = vmatpush.msra.mxu0 %v1727
        %v1729 = vand.u32 %v333, 4294901760
        %v1730 = vsub.f32 %v333, %v1729
        %1731 = vmatpush.msra.mxu0 %v1730
        %v1732 = vand.u32 %v332, 4294901760
        %v1733 = vsub.f32 %v332, %v1732
        %1734 = vmatpush.msra.mxu0 %v1733
        %v1735 = vand.u32 %v331, 4294901760
        %v1736 = vsub.f32 %v331, %v1735
        %1737 = vmatpush.msra.mxu0 %v1736
        %v1738 = vand.u32 %v330, 4294901760
        %v1739 = vsub.f32 %v330, %v1738
        %1740 = vmatpush.msra.mxu0 %v1739
        %v1741 = vand.u32 %v329, 4294901760
        %v1742 = vsub.f32 %v329, %v1741
        %1743 = vmatpush.msra.mxu0 %v1742
        %v1744 = vand.u32 %v328, 4294901760
        %v1745 = vsub.f32 %v328, %v1744
        %1746 = vmatpush.msra.mxu0 %v1745
        %v1747 = vand.u32 %v327, 4294901760
        %v1748 = vsub.f32 %v327, %v1747
        %1749 = vmatpush.msra.mxu0 %v1748
        %v1750 = vand.u32 %v326, 4294901760
        %v1751 = vsub.f32 %v326, %v1750
        %1752 = vmatpush.msra.mxu0 %v1751
        %v1753 = vand.u32 %v325, 4294901760
        %v1754 = vsub.f32 %v325, %v1753
        %1755 = vmatpush.msra.mxu0 %v1754
        %v1756 = vand.u32 %v324, 4294901760
        %v1757 = vsub.f32 %v324, %v1756
        %1758 = vmatpush.msra.mxu0 %v1757
        %v1759 = vand.u32 %v323, 4294901760
        %v1760 = vsub.f32 %v323, %v1759
        %1761 = vmatpush.msra.mxu0 %v1760
        %v1762 = vand.u32 %v322, 4294901760
        %v1763 = vsub.f32 %v322, %v1762
        %1764 = vmatpush.msra.mxu0 %v1763
        %v1765 = vand.u32 %v782, 4294901760
        %v1766 = vsub.f32 %v782, %v1765
        %1767 = vmatmul.f32.gmra.mxu0 %v1766
        %v1768 = vpop.f32.mrf.mxu0
        %v1769 = vadd.f32 %v1711, %v1768
        %v1770 = vand.u32 %v797, 4294901760
        %v1771 = vsub.f32 %v797, %v1770
        %1772 = vmatmul.f32.gmra.mxu0 %v1771
        %v1773 = vpop.f32.mrf.mxu0
        %v1774 = vadd.f32 %v1715, %v1773
        %1775 = vdwg.mxu0
        %v1776 = vand.u32 %v337, 4294901760
        %1777 = vmatpush.msra.mxu0 %v1776
        %v1778 = vand.u32 %v336, 4294901760
        %1779 = vmatpush.msra.mxu0 %v1778
        %v1780 = vand.u32 %v335, 4294901760
        %1781 = vmatpush.msra.mxu0 %v1780
        %v1782 = vand.u32 %v334, 4294901760
        %1783 = vmatpush.msra.mxu0 %v1782
        %v1784 = vand.u32 %v333, 4294901760
        %1785 = vmatpush.msra.mxu0 %v1784
        %v1786 = vand.u32 %v332, 4294901760
        %1787 = vmatpush.msra.mxu0 %v1786
        %v1788 = vand.u32 %v331, 4294901760
        %1789 = vmatpush.msra.mxu0 %v1788
        %v1790 = vand.u32 %v330, 4294901760
        %1791 = vmatpush.msra.mxu0 %v1790
        %v1792 = vand.u32 %v329, 4294901760
        %1793 = vmatpush.msra.mxu0 %v1792
        %v1794 = vand.u32 %v328, 4294901760
        %1795 = vmatpush.msra.mxu0 %v1794
        %v1796 = vand.u32 %v327, 4294901760
        %1797 = vmatpush.msra.mxu0 %v1796
        %v1798 = vand.u32 %v326, 4294901760
        %1799 = vmatpush.msra.mxu0 %v1798
        %v1800 = vand.u32 %v325, 4294901760
        %1801 = vmatpush.msra.mxu0 %v1800
        %v1802 = vand.u32 %v324, 4294901760
        %1803 = vmatpush.msra.mxu0 %v1802
        %v1804 = vand.u32 %v323, 4294901760
        %1805 = vmatpush.msra.mxu0 %v1804
        %v1806 = vand.u32 %v322, 4294901760
        %1807 = vmatpush.msra.mxu0 %v1806
        %v1808 = vand.u32 %v782, 4294901760
        %v1809 = vsub.f32 %v782, %v1808
        %v1810 = vand.u32 %v1809, 4294901760
        %1811 = vmatmul.f32.gmra.mxu0 %v1810
        %v1812 = vpop.f32.mrf.mxu0
        %v1813 = vadd.f32 %v1769, %v1812
        %v1814 = vand.u32 %v797, 4294901760
        %v1815 = vsub.f32 %v797, %v1814
        %v1816 = vand.u32 %v1815, 4294901760
        %1817 = vmatmul.f32.gmra.mxu0 %v1816
        %v1818 = vpop.f32.mrf.mxu0
        %v1819 = vadd.f32 %v1774, %v1818
        %1820 = vdwg.mxu0
        %v1821 = vand.u32 %v337, 4294901760
        %v1822 = vsub.f32 %v337, %v1821
        %v1823 = vand.u32 %v1822, 4294901760
        %1824 = vmatpush.msra.mxu0 %v1823
        %v1825 = vand.u32 %v336, 4294901760
        %v1826 = vsub.f32 %v336, %v1825
        %v1827 = vand.u32 %v1826, 4294901760
        %1828 = vmatpush.msra.mxu0 %v1827
        %v1829 = vand.u32 %v335, 4294901760
        %v1830 = vsub.f32 %v335, %v1829
        %v1831 = vand.u32 %v1830, 4294901760
        %1832 = vmatpush.msra.mxu0 %v1831
        %v1833 = vand.u32 %v334, 4294901760
        %v1834 = vsub.f32 %v334, %v1833
        %v1835 = vand.u32 %v1834, 4294901760
        %1836 = vmatpush.msra.mxu0 %v1835
        %v1837 = vand.u32 %v333, 4294901760
        %v1838 = vsub.f32 %v333, %v1837
        %v1839 = vand.u32 %v1838, 4294901760
        %1840 = vmatpush.msra.mxu0 %v1839
        %v1841 = vand.u32 %v332, 4294901760
        %v1842 = vsub.f32 %v332, %v1841
        %v1843 = vand.u32 %v1842, 4294901760
        %1844 = vmatpush.msra.mxu0 %v1843
        %v1845 = vand.u32 %v331, 4294901760
        %v1846 = vsub.f32 %v331, %v1845
        %v1847 = vand.u32 %v1846, 4294901760
        %1848 = vmatpush.msra.mxu0 %v1847
        %v1849 = vand.u32 %v330, 4294901760
        %v1850 = vsub.f32 %v330, %v1849
        %v1851 = vand.u32 %v1850, 4294901760
        %1852 = vmatpush.msra.mxu0 %v1851
        %v1853 = vand.u32 %v329, 4294901760
        %v1854 = vsub.f32 %v329, %v1853
        %v1855 = vand.u32 %v1854, 4294901760
        %1856 = vmatpush.msra.mxu0 %v1855
        %v1857 = vand.u32 %v328, 4294901760
        %v1858 = vsub.f32 %v328, %v1857
        %v1859 = vand.u32 %v1858, 4294901760
        %1860 = vmatpush.msra.mxu0 %v1859
        %v1861 = vand.u32 %v327, 4294901760
        %v1862 = vsub.f32 %v327, %v1861
        %v1863 = vand.u32 %v1862, 4294901760
        %1864 = vmatpush.msra.mxu0 %v1863
        %v1865 = vand.u32 %v326, 4294901760
        %v1866 = vsub.f32 %v326, %v1865
        %v1867 = vand.u32 %v1866, 4294901760
        %1868 = vmatpush.msra.mxu0 %v1867
        %v1869 = vand.u32 %v325, 4294901760
        %v1870 = vsub.f32 %v325, %v1869
        %v1871 = vand.u32 %v1870, 4294901760
        %1872 = vmatpush.msra.mxu0 %v1871
        %v1873 = vand.u32 %v324, 4294901760
        %v1874 = vsub.f32 %v324, %v1873
        %v1875 = vand.u32 %v1874, 4294901760
        %1876 = vmatpush.msra.mxu0 %v1875
        %v1877 = vand.u32 %v323, 4294901760
        %v1878 = vsub.f32 %v323, %v1877
        %v1879 = vand.u32 %v1878, 4294901760
        %1880 = vmatpush.msra.mxu0 %v1879
        %v1881 = vand.u32 %v322, 4294901760
        %v1882 = vsub.f32 %v322, %v1881
        %v1883 = vand.u32 %v1882, 4294901760
        %1884 = vmatpush.msra.mxu0 %v1883
        %v1885 = vand.u32 %v782, 4294901760
        %1886 = vmatmul.f32.gmra.mxu0 %v1885
        %v1887 = vpop.f32.mrf.mxu0
        %v1888 = vadd.f32 %v1813, %v1887
        %v1889 = vand.u32 %v797, 4294901760
        %1890 = vmatmul.f32.gmra.mxu0 %v1889
        %v1891 = vpop.f32.mrf.mxu0
        %v1892 = vadd.f32 %v1819, %v1891
        %1893 = vdwg.mxu0
        %v1894 = vand.u32 %v337, 4294901760
        %1895 = vmatpush.msra.mxu0 %v1894
        %v1896 = vand.u32 %v336, 4294901760
        %1897 = vmatpush.msra.mxu0 %v1896
        %v1898 = vand.u32 %v335, 4294901760
        %1899 = vmatpush.msra.mxu0 %v1898
        %v1900 = vand.u32 %v334, 4294901760
        %1901 = vmatpush.msra.mxu0 %v1900
        %v1902 = vand.u32 %v333, 4294901760
        %1903 = vmatpush.msra.mxu0 %v1902
        %v1904 = vand.u32 %v332, 4294901760
        %1905 = vmatpush.msra.mxu0 %v1904
        %v1906 = vand.u32 %v331, 4294901760
        %1907 = vmatpush.msra.mxu0 %v1906
        %v1908 = vand.u32 %v330, 4294901760
        %1909 = vmatpush.msra.mxu0 %v1908
        %v1910 = vand.u32 %v329, 4294901760
        %1911 = vmatpush.msra.mxu0 %v1910
        %v1912 = vand.u32 %v328, 4294901760
        %1913 = vmatpush.msra.mxu0 %v1912
        %v1914 = vand.u32 %v327, 4294901760
        %1915 = vmatpush.msra.mxu0 %v1914
        %v1916 = vand.u32 %v326, 4294901760
        %1917 = vmatpush.msra.mxu0 %v1916
        %v1918 = vand.u32 %v325, 4294901760
        %1919 = vmatpush.msra.mxu0 %v1918
        %v1920 = vand.u32 %v324, 4294901760
        %1921 = vmatpush.msra.mxu0 %v1920
        %v1922 = vand.u32 %v323, 4294901760
        %1923 = vmatpush.msra.mxu0 %v1922
        %v1924 = vand.u32 %v322, 4294901760
        %1925 = vmatpush.msra.mxu0 %v1924
        %v1926 = vand.u32 %v782, 4294901760
        %1927 = vmatmul.f32.gmra.mxu0 %v1926
        %v1928 = vpop.f32.mrf.mxu0
        %v1929 = vadd.f32 %v1888, %v1928
        %v1930 = vand.u32 %v797, 4294901760
        %1931 = vmatmul.f32.gmra.mxu0 %v1930
        %v1932 = vpop.f32.mrf.mxu0
        %v1933 = vadd.f32 %v1892, %v1932
        %1934 = vdwg.mxu0
        %v1935 = vand.u32 %v1561, 4294901760
        %1936 = vmatpush.msra.mxu0 %v1935
        %v1937 = vand.u32 %v1557, 4294901760
        %1938 = vmatpush.msra.mxu0 %v1937
        %v1939 = vand.u32 %v1553, 4294901760
        %1940 = vmatpush.msra.mxu0 %v1939
        %v1941 = vand.u32 %v1549, 4294901760
        %1942 = vmatpush.msra.mxu0 %v1941
        %v1943 = vand.u32 %v1545, 4294901760
        %1944 = vmatpush.msra.mxu0 %v1943
        %v1945 = vand.u32 %v1541, 4294901760
        %1946 = vmatpush.msra.mxu0 %v1945
        %v1947 = vand.u32 %v1537, 4294901760
        %1948 = vmatpush.msra.mxu0 %v1947
        %v1949 = vand.u32 %v1533, 4294901760
        %1950 = vmatpush.msra.mxu0 %v1949
        %v1951 = vand.u32 %v1529, 4294901760
        %1952 = vmatpush.msra.mxu0 %v1951
        %v1953 = vand.u32 %v1525, 4294901760
        %1954 = vmatpush.msra.mxu0 %v1953
        %v1955 = vand.u32 %v1521, 4294901760
        %1956 = vmatpush.msra.mxu0 %v1955
        %v1957 = vand.u32 %v1517, 4294901760
        %1958 = vmatpush.msra.mxu0 %v1957
        %v1959 = vand.u32 %v1513, 4294901760
        %1960 = vmatpush.msra.mxu0 %v1959
        %v1961 = vand.u32 %v1509, 4294901760
        %1962 = vmatpush.msra.mxu0 %v1961
        %v1963 = vand.u32 %v1505, 4294901760
        %1964 = vmatpush.msra.mxu0 %v1963
        %v1965 = vand.u32 %v1501, 4294901760
        %1966 = vmatpush.msra.mxu0 %v1965
        %v1967 = vand.u32 %v782, 4294901760
        %v1968 = vsub.f32 %v782, %v1967
        %v1969 = vand.u32 %v1968, 4294901760
        %v1970 = vsub.f32 %v1968, %v1969
        %v1971 = vand.u32 %v1970, 4294901760
        %1972 = vmatmul.f32.gmra.mxu0 %v1971
        %v1973 = vpop.f32.mrf.mxu0
        %v1974 = vadd.f32 0.0, %v1973
        %v1975 = vand.u32 %v797, 4294901760
        %v1976 = vsub.f32 %v797, %v1975
        %v1977 = vand.u32 %v1976, 4294901760
        %v1978 = vsub.f32 %v1976, %v1977
        %v1979 = vand.u32 %v1978, 4294901760
        %1980 = vmatmul.f32.gmra.mxu0 %v1979
        %v1981 = vpop.f32.mrf.mxu0
        %v1982 = vadd.f32 0.0, %v1981
        %1983 = vdwg.mxu0
        %v1984 = vand.u32 %v1561, 4294901760
        %v1985 = vsub.f32 %v1561, %v1984
        %v1986 = vand.u32 %v1985, 4294901760
        %v1987 = vsub.f32 %v1985, %v1986
        %v1988 = vand.u32 %v1987, 4294901760
        %1989 = vmatpush.msra.mxu0 %v1988
        %v1990 = vand.u32 %v1557, 4294901760
        %v1991 = vsub.f32 %v1557, %v1990
        %v1992 = vand.u32 %v1991, 4294901760
        %v1993 = vsub.f32 %v1991, %v1992
        %v1994 = vand.u32 %v1993, 4294901760
        %1995 = vmatpush.msra.mxu0 %v1994
        %v1996 = vand.u32 %v1553, 4294901760
        %v1997 = vsub.f32 %v1553, %v1996
        %v1998 = vand.u32 %v1997, 4294901760
        %v1999 = vsub.f32 %v1997, %v1998
        %v2000 = vand.u32 %v1999, 4294901760
        %2001 = vmatpush.msra.mxu0 %v2000
        %v2002 = vand.u32 %v1549, 4294901760
        %v2003 = vsub.f32 %v1549, %v2002
        %v2004 = vand.u32 %v2003, 4294901760
        %v2005 = vsub.f32 %v2003, %v2004
        %v2006 = vand.u32 %v2005, 4294901760
        %2007 = vmatpush.msra.mxu0 %v2006
        %v2008 = vand.u32 %v1545, 4294901760
        %v2009 = vsub.f32 %v1545, %v2008
        %v2010 = vand.u32 %v2009, 4294901760
        %v2011 = vsub.f32 %v2009, %v2010
        %v2012 = vand.u32 %v2011, 4294901760
        %2013 = vmatpush.msra.mxu0 %v2012
        %v2014 = vand.u32 %v1541, 4294901760
        %v2015 = vsub.f32 %v1541, %v2014
        %v2016 = vand.u32 %v2015, 4294901760
        %v2017 = vsub.f32 %v2015, %v2016
        %v2018 = vand.u32 %v2017, 4294901760
        %2019 = vmatpush.msra.mxu0 %v2018
        %v2020 = vand.u32 %v1537, 4294901760
        %v2021 = vsub.f32 %v1537, %v2020
        %v2022 = vand.u32 %v2021, 4294901760
        %v2023 = vsub.f32 %v2021, %v2022
        %v2024 = vand.u32 %v2023, 4294901760
        %2025 = vmatpush.msra.mxu0 %v2024
        %v2026 = vand.u32 %v1533, 4294901760
        %v2027 = vsub.f32 %v1533, %v2026
        %v2028 = vand.u32 %v2027, 4294901760
        %v2029 = vsub.f32 %v2027, %v2028
        %v2030 = vand.u32 %v2029, 4294901760
        %2031 = vmatpush.msra.mxu0 %v2030
        %v2032 = vand.u32 %v1529, 4294901760
        %v2033 = vsub.f32 %v1529, %v2032
        %v2034 = vand.u32 %v2033, 4294901760
        %v2035 = vsub.f32 %v2033, %v2034
        %v2036 = vand.u32 %v2035, 4294901760
        %2037 = vmatpush.msra.mxu0 %v2036
        %v2038 = vand.u32 %v1525, 4294901760
        %v2039 = vsub.f32 %v1525, %v2038
        %v2040 = vand.u32 %v2039, 4294901760
        %v2041 = vsub.f32 %v2039, %v2040
        %v2042 = vand.u32 %v2041, 4294901760
        %2043 = vmatpush.msra.mxu0 %v2042
        %v2044 = vand.u32 %v1521, 4294901760
        %v2045 = vsub.f32 %v1521, %v2044
        %v2046 = vand.u32 %v2045, 4294901760
        %v2047 = vsub.f32 %v2045, %v2046
        %v2048 = vand.u32 %v2047, 4294901760
        %2049 = vmatpush.msra.mxu0 %v2048
        %v2050 = vand.u32 %v1517, 4294901760
        %v2051 = vsub.f32 %v1517, %v2050
        %v2052 = vand.u32 %v2051, 4294901760
        %v2053 = vsub.f32 %v2051, %v2052
        %v2054 = vand.u32 %v2053, 4294901760
        %2055 = vmatpush.msra.mxu0 %v2054
        %v2056 = vand.u32 %v1513, 4294901760
        %v2057 = vsub.f32 %v1513, %v2056
        %v2058 = vand.u32 %v2057, 4294901760
        %v2059 = vsub.f32 %v2057, %v2058
        %v2060 = vand.u32 %v2059, 4294901760
        %2061 = vmatpush.msra.mxu0 %v2060
        %v2062 = vand.u32 %v1509, 4294901760
        %v2063 = vsub.f32 %v1509, %v2062
        %v2064 = vand.u32 %v2063, 4294901760
        %v2065 = vsub.f32 %v2063, %v2064
        %v2066 = vand.u32 %v2065, 4294901760
        %2067 = vmatpush.msra.mxu0 %v2066
        %v2068 = vand.u32 %v1505, 4294901760
        %v2069 = vsub.f32 %v1505, %v2068
        %v2070 = vand.u32 %v2069, 4294901760
        %v2071 = vsub.f32 %v2069, %v2070
        %v2072 = vand.u32 %v2071, 4294901760
        %2073 = vmatpush.msra.mxu0 %v2072
        %v2074 = vand.u32 %v1501, 4294901760
        %v2075 = vsub.f32 %v1501, %v2074
        %v2076 = vand.u32 %v2075, 4294901760
        %v2077 = vsub.f32 %v2075, %v2076
        %v2078 = vand.u32 %v2077, 4294901760
        %2079 = vmatpush.msra.mxu0 %v2078
        %v2080 = vand.u32 %v782, 4294901760
        %2081 = vmatmul.f32.gmra.mxu0 %v2080
        %v2082 = vpop.f32.mrf.mxu0
        %v2083 = vadd.f32 %v1974, %v2082
        %v2084 = vand.u32 %v797, 4294901760
        %2085 = vmatmul.f32.gmra.mxu0 %v2084
        %v2086 = vpop.f32.mrf.mxu0
        %v2087 = vadd.f32 %v1982, %v2086
        %2088 = vdwg.mxu0
        %v2089 = vand.u32 %v1561, 4294901760
        %v2090 = vsub.f32 %v1561, %v2089
        %2091 = vmatpush.msra.mxu0 %v2090
        %v2092 = vand.u32 %v1557, 4294901760
        %v2093 = vsub.f32 %v1557, %v2092
        %2094 = vmatpush.msra.mxu0 %v2093
        %v2095 = vand.u32 %v1553, 4294901760
        %v2096 = vsub.f32 %v1553, %v2095
        %2097 = vmatpush.msra.mxu0 %v2096
        %v2098 = vand.u32 %v1549, 4294901760
        %v2099 = vsub.f32 %v1549, %v2098
        %2100 = vmatpush.msra.mxu0 %v2099
        %v2101 = vand.u32 %v1545, 4294901760
        %v2102 = vsub.f32 %v1545, %v2101
        %2103 = vmatpush.msra.mxu0 %v2102
        %v2104 = vand.u32 %v1541, 4294901760
        %v2105 = vsub.f32 %v1541, %v2104
        %2106 = vmatpush.msra.mxu0 %v2105
        %v2107 = vand.u32 %v1537, 4294901760
        %v2108 = vsub.f32 %v1537, %v2107
        %2109 = vmatpush.msra.mxu0 %v2108
        %v2110 = vand.u32 %v1533, 4294901760
        %v2111 = vsub.f32 %v1533, %v2110
        %2112 = vmatpush.msra.mxu0 %v2111
        %v2113 = vand.u32 %v1529, 4294901760
        %v2114 = vsub.f32 %v1529, %v2113
        %2115 = vmatpush.msra.mxu0 %v2114
        %v2116 = vand.u32 %v1525, 4294901760
        %v2117 = vsub.f32 %v1525, %v2116
        %2118 = vmatpush.msra.mxu0 %v2117
        %v2119 = vand.u32 %v1521, 4294901760
        %v2120 = vsub.f32 %v1521, %v2119
        %2121 = vmatpush.msra.mxu0 %v2120
        %v2122 = vand.u32 %v1517, 4294901760
        %v2123 = vsub.f32 %v1517, %v2122
        %2124 = vmatpush.msra.mxu0 %v2123
        %v2125 = vand.u32 %v1513, 4294901760
        %v2126 = vsub.f32 %v1513, %v2125
        %2127 = vmatpush.msra.mxu0 %v2126
        %v2128 = vand.u32 %v1509, 4294901760
        %v2129 = vsub.f32 %v1509, %v2128
        %2130 = vmatpush.msra.mxu0 %v2129
        %v2131 = vand.u32 %v1505, 4294901760
        %v2132 = vsub.f32 %v1505, %v2131
        %2133 = vmatpush.msra.mxu0 %v2132
        %v2134 = vand.u32 %v1501, 4294901760
        %v2135 = vsub.f32 %v1501, %v2134
        %2136 = vmatpush.msra.mxu0 %v2135
        %v2137 = vand.u32 %v782, 4294901760
        %v2138 = vsub.f32 %v782, %v2137
        %2139 = vmatmul.f32.gmra.mxu0 %v2138
        %v2140 = vpop.f32.mrf.mxu0
        %v2141 = vadd.f32 %v2083, %v2140
        %v2142 = vand.u32 %v797, 4294901760
        %v2143 = vsub.f32 %v797, %v2142
        %2144 = vmatmul.f32.gmra.mxu0 %v2143
        %v2145 = vpop.f32.mrf.mxu0
        %v2146 = vadd.f32 %v2087, %v2145
        %2147 = vdwg.mxu0
        %v2148 = vand.u32 %v1561, 4294901760
        %2149 = vmatpush.msra.mxu0 %v2148
        %v2150 = vand.u32 %v1557, 4294901760
        %2151 = vmatpush.msra.mxu0 %v2150
        %v2152 = vand.u32 %v1553, 4294901760
        %2153 = vmatpush.msra.mxu0 %v2152
        %v2154 = vand.u32 %v1549, 4294901760
        %2155 = vmatpush.msra.mxu0 %v2154
        %v2156 = vand.u32 %v1545, 4294901760
        %2157 = vmatpush.msra.mxu0 %v2156
        %v2158 = vand.u32 %v1541, 4294901760
        %2159 = vmatpush.msra.mxu0 %v2158
        %v2160 = vand.u32 %v1537, 4294901760
        %2161 = vmatpush.msra.mxu0 %v2160
        %v2162 = vand.u32 %v1533, 4294901760
        %2163 = vmatpush.msra.mxu0 %v2162
        %v2164 = vand.u32 %v1529, 4294901760
        %2165 = vmatpush.msra.mxu0 %v2164
        %v2166 = vand.u32 %v1525, 4294901760
        %2167 = vmatpush.msra.mxu0 %v2166
        %v2168 = vand.u32 %v1521, 4294901760
        %2169 = vmatpush.msra.mxu0 %v2168
        %v2170 = vand.u32 %v1517, 4294901760
        %2171 = vmatpush.msra.mxu0 %v2170
        %v2172 = vand.u32 %v1513, 4294901760
        %2173 = vmatpush.msra.mxu0 %v2172
        %v2174 = vand.u32 %v1509, 4294901760
        %2175 = vmatpush.msra.mxu0 %v2174
        %v2176 = vand.u32 %v1505, 4294901760
        %2177 = vmatpush.msra.mxu0 %v2176
        %v2178 = vand.u32 %v1501, 4294901760
        %2179 = vmatpush.msra.mxu0 %v2178
        %v2180 = vand.u32 %v782, 4294901760
        %v2181 = vsub.f32 %v782, %v2180
        %v2182 = vand.u32 %v2181, 4294901760
        %2183 = vmatmul.f32.gmra.mxu0 %v2182
        %v2184 = vpop.f32.mrf.mxu0
        %v2185 = vadd.f32 %v2141, %v2184
        %v2186 = vand.u32 %v797, 4294901760
        %v2187 = vsub.f32 %v797, %v2186
        %v2188 = vand.u32 %v2187, 4294901760
        %2189 = vmatmul.f32.gmra.mxu0 %v2188
        %v2190 = vpop.f32.mrf.mxu0
        %v2191 = vadd.f32 %v2146, %v2190
        %2192 = vdwg.mxu0
        %v2193 = vand.u32 %v1561, 4294901760
        %v2194 = vsub.f32 %v1561, %v2193
        %v2195 = vand.u32 %v2194, 4294901760
        %2196 = vmatpush.msra.mxu0 %v2195
        %v2197 = vand.u32 %v1557, 4294901760
        %v2198 = vsub.f32 %v1557, %v2197
        %v2199 = vand.u32 %v2198, 4294901760
        %2200 = vmatpush.msra.mxu0 %v2199
        %v2201 = vand.u32 %v1553, 4294901760
        %v2202 = vsub.f32 %v1553, %v2201
        %v2203 = vand.u32 %v2202, 4294901760
        %2204 = vmatpush.msra.mxu0 %v2203
        %v2205 = vand.u32 %v1549, 4294901760
        %v2206 = vsub.f32 %v1549, %v2205
        %v2207 = vand.u32 %v2206, 4294901760
        %2208 = vmatpush.msra.mxu0 %v2207
        %v2209 = vand.u32 %v1545, 4294901760
        %v2210 = vsub.f32 %v1545, %v2209
        %v2211 = vand.u32 %v2210, 4294901760
        %2212 = vmatpush.msra.mxu0 %v2211
        %v2213 = vand.u32 %v1541, 4294901760
        %v2214 = vsub.f32 %v1541, %v2213
        %v2215 = vand.u32 %v2214, 4294901760
        %2216 = vmatpush.msra.mxu0 %v2215
        %v2217 = vand.u32 %v1537, 4294901760
        %v2218 = vsub.f32 %v1537, %v2217
        %v2219 = vand.u32 %v2218, 4294901760
        %2220 = vmatpush.msra.mxu0 %v2219
        %v2221 = vand.u32 %v1533, 4294901760
        %v2222 = vsub.f32 %v1533, %v2221
        %v2223 = vand.u32 %v2222, 4294901760
        %2224 = vmatpush.msra.mxu0 %v2223
        %v2225 = vand.u32 %v1529, 4294901760
        %v2226 = vsub.f32 %v1529, %v2225
        %v2227 = vand.u32 %v2226, 4294901760
        %2228 = vmatpush.msra.mxu0 %v2227
        %v2229 = vand.u32 %v1525, 4294901760
        %v2230 = vsub.f32 %v1525, %v2229
        %v2231 = vand.u32 %v2230, 4294901760
        %2232 = vmatpush.msra.mxu0 %v2231
        %v2233 = vand.u32 %v1521, 4294901760
        %v2234 = vsub.f32 %v1521, %v2233
        %v2235 = vand.u32 %v2234, 4294901760
        %2236 = vmatpush.msra.mxu0 %v2235
        %v2237 = vand.u32 %v1517, 4294901760
        %v2238 = vsub.f32 %v1517, %v2237
        %v2239 = vand.u32 %v2238, 4294901760
        %2240 = vmatpush.msra.mxu0 %v2239
        %v2241 = vand.u32 %v1513, 4294901760
        %v2242 = vsub.f32 %v1513, %v2241
        %v2243 = vand.u32 %v2242, 4294901760
        %2244 = vmatpush.msra.mxu0 %v2243
        %v2245 = vand.u32 %v1509, 4294901760
        %v2246 = vsub.f32 %v1509, %v2245
        %v2247 = vand.u32 %v2246, 4294901760
        %2248 = vmatpush.msra.mxu0 %v2247
        %v2249 = vand.u32 %v1505, 4294901760
        %v2250 = vsub.f32 %v1505, %v2249
        %v2251 = vand.u32 %v2250, 4294901760
        %2252 = vmatpush.msra.mxu0 %v2251
        %v2253 = vand.u32 %v1501, 4294901760
        %v2254 = vsub.f32 %v1501, %v2253
        %v2255 = vand.u32 %v2254, 4294901760
        %2256 = vmatpush.msra.mxu0 %v2255
        %v2257 = vand.u32 %v782, 4294901760
        %2258 = vmatmul.f32.gmra.mxu0 %v2257
        %v2259 = vpop.f32.mrf.mxu0
        %v2260 = vadd.f32 %v2185, %v2259
        %v2261 = vand.u32 %v797, 4294901760
        %2262 = vmatmul.f32.gmra.mxu0 %v2261
        %v2263 = vpop.f32.mrf.mxu0
        %v2264 = vadd.f32 %v2191, %v2263
        %2265 = vdwg.mxu0
        %v2266 = vand.u32 %v1561, 4294901760
        %2267 = vmatpush.msra.mxu0 %v2266
        %v2268 = vand.u32 %v1557, 4294901760
        %2269 = vmatpush.msra.mxu0 %v2268
        %v2270 = vand.u32 %v1553, 4294901760
        %2271 = vmatpush.msra.mxu0 %v2270
        %v2272 = vand.u32 %v1549, 4294901760
        %2273 = vmatpush.msra.mxu0 %v2272
        %v2274 = vand.u32 %v1545, 4294901760
        %2275 = vmatpush.msra.mxu0 %v2274
        %v2276 = vand.u32 %v1541, 4294901760
        %2277 = vmatpush.msra.mxu0 %v2276
        %v2278 = vand.u32 %v1537, 4294901760
        %2279 = vmatpush.msra.mxu0 %v2278
        %v2280 = vand.u32 %v1533, 4294901760
        %2281 = vmatpush.msra.mxu0 %v2280
        %v2282 = vand.u32 %v1529, 4294901760
        %2283 = vmatpush.msra.mxu0 %v2282
        %v2284 = vand.u32 %v1525, 4294901760
        %2285 = vmatpush.msra.mxu0 %v2284
        %v2286 = vand.u32 %v1521, 4294901760
        %2287 = vmatpush.msra.mxu0 %v2286
        %v2288 = vand.u32 %v1517, 4294901760
        %2289 = vmatpush.msra.mxu0 %v2288
        %v2290 = vand.u32 %v1513, 4294901760
        %2291 = vmatpush.msra.mxu0 %v2290
        %v2292 = vand.u32 %v1509, 4294901760
        %2293 = vmatpush.msra.mxu0 %v2292
        %v2294 = vand.u32 %v1505, 4294901760
        %2295 = vmatpush.msra.mxu0 %v2294
        %v2296 = vand.u32 %v1501, 4294901760
        %2297 = vmatpush.msra.mxu0 %v2296
        %v2298 = vand.u32 %v782, 4294901760
        %2299 = vmatmul.f32.gmra.mxu0 %v2298
        %v2300 = vpop.f32.mrf.mxu0
        %v2301 = vadd.f32 %v2260, %v2300
        %v2302 = vand.u32 %v797, 4294901760
        %2303 = vmatmul.f32.gmra.mxu0 %v2302
        %v2304 = vpop.f32.mrf.mxu0
        %v2305 = vadd.f32 %v2264, %v2304
        %2306 = vdwg.mxu0
        %2307 = vst [vmem:[%s309] sm:$0xff] %v320
        %2308 = vst [vmem:[%s309 + $0x20] sm:$0xff] %v321
        %2309 = vst [vmem:[%s309 + $0x8] sm:$0xff] %v1929
        %2310 = vst [vmem:[%s309 + $0x28] sm:$0xff] %v1933
        %v2311 = vmul.f32 %v320, %v1929
        %v2312 = vmul.f32 %v321, %v1933
        %2313 = vst [vmem:[%s309 + $0x10] sm:$0xff] %v2311
        %2314 = vst [vmem:[%s309 + $0x30] sm:$0xff] %v2312
        %v2315 = vmul.f32 %v320, %v2301
        %v2316 = vmul.f32 %v321, %v2305
        %2317 = vst [vmem:[%s309 + $0x18] sm:$0xff] %v2315
        %2318 = vst [vmem:[%s309 + $0x38] sm:$0xff] %v2316
        %s2319 = sand.u32 %s158, 1
        %s2320 = scalar_lea.sflag [#allocation4], %s2319
        %s2321 = sand.u32 %s158, 1
        %s2322 = smul.addr %s2321, 64
        %s2323 = scalar_lea.vmem [#allocation7], %s2322
        // Predicated region
        $region49: #{tpu_custom_call.1} parent=39 // pred_check
          %p2324 = pneg %p168
        $region50: #{tpu_custom_call.1} parent=39 // pred_check_branch
          %2326 = sbr.rel (%p2324) target = $region52
        $region51: #{tpu_custom_call.1} parent=39 // pred_region
          %2328 = vsyncadd %s2320, 0
          %s2329 = smul.addr %s25, 8
          %s2330 = smul.addr %s2329, 8
          %s2331 = scalar_lea.hbm %s5, %s2330
          %s2332 = sshll.u32 %s2323, 4
          %s2333 = int_to_ptr.vmem [resolvable:$true] %s2332
          %s2334 = sshll.u32 %s2331, 4
          %s2335 = int_to_ptr.hbm [resolvable:$true] %s2334
          %2340 = dma.vmem_to_hbm [thread:$0]  %s2333, 1024, %s2335, %s2320, 512, 512, 32
        $region52: #{tpu_custom_call.1} parent=39 // pred_fallthru
          _
      $region40: #{tpu_custom_call.1} parent=5 // pred_fallthru
        _
      %p2341 = scmp.le.s32.totalorder 2, %s20
      // Predicated region
      $region53: #{tpu_custom_call.1} parent=5 // pred_check
        %p2342 = pneg %p2341
      $region54: #{tpu_custom_call.1} parent=5 // pred_check_branch
        %2344 = sbr.rel (%p2342) target = $region56
      $region55: #{tpu_custom_call.1} parent=5 // pred_region
        %s2345 = ssub.s32 %s20, 2
        // Predicated region
        $region57: #{tpu_custom_call.1} parent=55 // pred_check
          %p2346 = pneg %p174
        $region58: #{tpu_custom_call.1} parent=55 // pred_check_branch
          %2348 = sbr.rel (%p2346) target = $region60
        $region59: #{tpu_custom_call.1} parent=55 // pred_region
          %s2349 = sand.u32 %s159, 1
          %s2350 = scalar_lea.sflag [#allocation4], %s2349
          %s2351 = sand.u32 %s159, 1
          %s2352 = smul.addr %s2351, 64
          %s2353 = scalar_lea.vmem [#allocation7], %s2352
          %2355 = dma.done %s2350, 1024
        $region60: #{tpu_custom_call.1} parent=55 // pred_fallthru
          _
      $region56: #{tpu_custom_call.1} parent=5 // pred_fallthru
        _
    $region6: #{tpu_custom_call.1} parent=1 // loop_footer
      %s24 = sadd.s32 1, %s20
    $region7: #{tpu_custom_call.1} parent=1 // loop_footer_branch
      %19 = sbr.rel target = $region3
    $region8: #{tpu_custom_call.1} parent=1 // loop_exit
      _
    %2356 = vsyncpa [#allocation3], 1
    %s2357 = scalar_lea.sflag [#allocation3], 1
    %2358 = vsyncpa %s2357, 1
    %2359 = vsyncpa [#allocation6], 1
    %s2360 = scalar_lea.sflag [#allocation6], 1
    %2361 = vsyncpa %s2360, 1
    %2362 = vsyncpa [#allocation4], 1
    %s2363 = scalar_lea.sflag [#allocation4], 1
    %2364 = vsyncpa %s2363, 1

</llo_original>
